<compile_context>
chip_gen: v5e
topology: v5e:2x2
jax: 0.10.0
libtpu: 0.0.40
codegen_flags: <defaults>
</compile_context>

<pallas_src>
import jax
import jax.numpy as jnp
import numpy as np
from jax.experimental import pallas as pl
from jax.experimental.pallas import tpu as pltpu

# Make the pure-JAX reference (and the f32-parity path) use true f32 matmuls on
# TPU instead of XLA's default reduced-precision passes, so the 1e-4 check is
# meaningful.
jax.config.update("jax_default_matmul_precision", "highest")


# ------------------------------ Pallas kernel ------------------------------ #

def fused_dqn_kernel(x_ref, mw1_ref, w_ref, v_ref, o_ref):
    """x:(bm,CIN)  mw1:(CIN,P)  w:(3,P,P)  v:(8,P)  o:(bm,P).

    w rows: [fc2^T, fc3^T, fc4^T] (all zero-padded to PxP).
    v rows: [bn1_scale, bn1_shift(+fc1 bias +conv bias), bn2_scale,
             bn2_shift(+fc2 bias), fc3 bias, fc4 bias, 0, 0].
    Padded lanes carry scale=1 / shift=0 so they stay exactly zero through
    every ReLU; fc4's padded output columns stay zero and are sliced outside.
    """
    f32 = jnp.float32
    dd = w_ref.dtype                       # dot operand dtype (bf16 or f32)
    v = v_ref[...]

    # conv1 + flatten + fc1: the conv matrix is folded into fc1 offline, so
    # this single matmul covers all three.
    h = jnp.dot(x_ref[...], mw1_ref[...], preferred_element_type=f32)
    # folded BN1 + relu (elementwise stays f32)
    h = jnp.maximum(h * v[0:1, :] + v[1:2, :], 0.0)

    # fc2 + folded BN2 + relu
    h = jnp.dot(h.astype(dd), w_ref[0], preferred_element_type=f32)
    h = jnp.maximum(h * v[2:3, :] + v[3:4, :], 0.0)

    # fc3 + relu
    h = jnp.dot(h.astype(dd), w_ref[1], preferred_element_type=f32)
    h = jnp.maximum(h + v[4:5, :], 0.0)

    # fc4 (no activation) — kept lane-dense at P; real 8 cols sliced outside.
    out = jnp.dot(h.astype(dd), w_ref[2], preferred_element_type=f32)
    o_ref[...] = (out + v[5:6, :]).astype(o_ref.dtype)


# -------------------- one-time parameter preparation ----------------------- #

def _round_up(a, b):
    return -(-a // b) * b


def _build_conv_matrix(conv_w, H, W, k, Ho, Wo):
    """(H*W, 8*Ho*Wo) matrix s.t. x_flat @ M == flatten(conv2d(x)) (no bias)."""
    C = conv_w.shape[0]
    rows, cols, ci, dhi, dwi = [], [], [], [], []
    for c in range(C):
        for ho in range(Ho):
            for wo in range(Wo):
                for dh in range(k):
                    for dw in range(k):
                        rows.append((ho + dh) * W + wo * k + dw)
                        cols.append(c * Ho * Wo + ho * Wo + wo)
                        ci.append(c)
                        dhi.append(dh)
                        dwi.append(dw)
    vals = conv_w[jnp.array(ci), 0, jnp.array(dhi), jnp.array(dwi)]
    M = jnp.zeros((H * W, C * Ho * Wo), jnp.float32)
    return M.at[jnp.array(rows), jnp.array(cols)].set(vals.astype(jnp.float32))


def prepare_params(params, n_agents, eps=1e-5, dot_dtype=jnp.bfloat16):
    """Fold/transpose/pad everything once; returns only arrays (jit-friendly)."""
    k = n_agents + 1
    H, W = 8, n_agents * (n_agents + 1)
    Ho, Wo = H - k + 1, (W - k) // k + 1
    F = 8 * Ho * Wo                                   # fc_input_size
    cin = H * W

    H1 = params["w1"].shape[0]
    H2 = params["w2"].shape[0]
    H3 = params["w3"].shape[0]
    OUT = params["w4"].shape[0]
    P = int(max(128, _round_up(max(F, H1, H2, H3, OUT), 128)))   # lane width
    CIN = int(_round_up(cin, 128))                               # padded K

    # conv-as-matmul folded straight into fc1 (no activation in between):
    # conv_out_flat @ W1^T == x_flat @ (M @ W1^T) + (W1 @ conv_bias_vec).
    M = _build_conv_matrix(params["conv_w"], H, W, k, Ho, Wo)    # (cin, F)
    mw1 = M @ params["w1"].T.astype(jnp.float32)                 # (cin, H1)
    mw1_p = jnp.zeros((CIN, P), jnp.float32).at[:cin, :H1].set(mw1)

    def pad_mat(wT, r, c):
        return jnp.zeros((P, P), jnp.float32).at[:r, :c].set(
            wT.astype(jnp.float32))

    w_stack = jnp.stack([
        pad_mat(params["w2"].T, H1, H2),
        pad_mat(params["w3"].T, H2, H3),
        pad_mat(params["w4"].T, H3, OUT),   # fc4 padded to P cols (lane-dense)
    ])                                       # (3, P, P)

    # conv bias folded through fc1; BatchNorm1d (eval) folded to scale/shift.
    cbv = jnp.repeat(params["conv_b"], Ho * Wo)        # (F,)
    b1_eff = params["w1"] @ cbv + params["b1"]
    s1 = params["bn1_g"] / jnp.sqrt(params["bn1_v"] + eps)
    t1 = (b1_eff - params["bn1_m"]) * s1 + params["bn1_b"]
    s2 = params["bn2_g"] / jnp.sqrt(params["bn2_v"] + eps)
    t2 = (params["b2"] - params["bn2_m"]) * s2 + params["bn2_b"]

    def pad_vec(v, fill=0.0):
        return jnp.full((P,), fill, jnp.float32).at[:v.shape[0]].set(
            v.astype(jnp.float32))

    vecs = jnp.zeros((8, P), jnp.float32)              # sublane-aligned (8, P)
    vecs = vecs.at[0].set(pad_vec(s1, 1.0))
    vecs = vecs.at[1].set(pad_vec(t1))
    vecs = vecs.at[2].set(pad_vec(s2, 1.0))
    vecs = vecs.at[3].set(pad_vec(t2))
    vecs = vecs.at[4].set(pad_vec(params["b3"]))
    vecs = vecs.at[5].set(pad_vec(params["b4"]))

    return {"mw1": mw1_p.astype(dot_dtype),            # dot operands (bf16/f32)
            "w": w_stack.astype(dot_dtype),
            "v": vecs}                                  # elementwise stays f32


# --------------------------------- wrapper ---------------------------------- #

def dqn_conv_forward(x, folded, out_features=8, *, block_rows=512):
    mw1, w, v = folded["mw1"], folded["w"], folded["v"]
    CIN, P = mw1.shape
    N = x.shape[0]
    x_flat = x.reshape(N, -1)                          # free contiguous reshape
    cin = x_flat.shape[1]

    # Row blocking: >= 2 blocks whenever N >= 2*bm so ("parallel",) actually
    # shards across both v7x TensorCores; 8-row aligned; capped at block_rows
    # so every buffer stays tiny even on v7x's 64 MiB VMEM.
    bm = int(min(block_rows, max(8, _round_up(pl.cdiv(N, 2), 8))))
    Np = int(_round_up(N, bm))
    grid = (Np // bm,)

    # Single pad: batch rows -> Np, K lanes 96 -> 128, cast to dot dtype.
    x_p = jnp.zeros((Np, CIN), mw1.dtype).at[:N, :cin].set(
        x_flat.astype(mw1.dtype))

    flops = int(2 * Np * P * (CIN + 3 * P))
    bytes_accessed = int(x_p.size * x_p.dtype.itemsize
                         + mw1.size * mw1.dtype.itemsize
                         + w.size * w.dtype.itemsize
                         + v.size * 4 + Np * P * 4)

    out = pl.pallas_call(
        fused_dqn_kernel,
        out_shape=jax.ShapeDtypeStruct((Np, P), jnp.float32),
        grid=grid,
        in_specs=[
            pl.BlockSpec((bm, CIN), lambda i: (i, 0)),   # x rows tiled
            pl.BlockSpec(mw1.shape, lambda i: (0, 0)),   # weights resident
            pl.BlockSpec(w.shape, lambda i: (0, 0, 0)),
            pl.BlockSpec(v.shape, lambda i: (0, 0)),
        ],
        out_specs=pl.BlockSpec((bm, P), lambda i: (i, 0)),  # lane-dense store
        compiler_params=pltpu.CompilerParams(
            dimension_semantics=("parallel",)),
        cost_estimate=pl.CostEstimate(flops=flops, transcendentals=0,
                                      bytes_accessed=bytes_accessed),
    )(x_p, mw1, w, v)

    return out[:N, :out_features]


# --------------------------- pure-JAX reference ----------------------------- #

def dqn_conv_reference(x, params, n_agents):
    k = n_agents + 1
    N = x.shape[0]
    out = jax.lax.conv_general_dilated(
        x, params["conv_w"], window_strides=(1, k), padding="VALID",
        dimension_numbers=("NCHW", "OIHW", "NCHW"),
    ) + params["conv_b"].reshape(1, 8, 1, 1)
    xf = out.reshape(N, -1)

    def bn(h, gamma, beta, mean, var, eps=1e-5):
        return (h - mean) / jnp.sqrt(var + eps) * gamma + beta

    h = jnp.maximum(bn(xf @ params["w1"].T + params["b1"],
                       params["bn1_g"], params["bn1_b"],
                       params["bn1_m"], params["bn1_v"]), 0.0)
    h = jnp.maximum(bn(h @ params["w2"].T + params["b2"],
                       params["bn2_g"], params["bn2_b"],
                       params["bn2_m"], params["bn2_v"]), 0.0)
    h = jnp.maximum(h @ params["w3"].T + params["b3"], 0.0)
    return h @ params["w4"].T + params["b4"]


# ---------------------------------- main ------------------------------------ #

if __name__ == "__main__":
    n_agents = 3
    hidden_size = 32
    k = n_agents + 1
    N = 2
    H_in, W_in = 8, n_agents * (n_agents + 1)        # -> x shape (2, 1, 8, 12)
    F = n_agents * (8 - n_agents) * 8                # fc_input_size = 120
    H1, H2, H3, OUT = hidden_size, hidden_size // 2, hidden_size // 4, 8

    key = jax.random.PRNGKey(0)
    ks = jax.random.split(key, 17)

    def rnd(kk, shape, scale=0.1):
        return (scale * jax.random.normal(kk, shape)).astype(jnp.float32)

    params = {
        "conv_w": rnd(ks[0], (8, 1, k, k)),
        "conv_b": rnd(ks[1], (8,)),
        "w1": rnd(ks[2], (H1, F)),  "b1": rnd(ks[3], (H1,)),
        "bn1_g": 1.0 + rnd(ks[4], (H1,)), "bn1_b": rnd(ks[5], (H1,)),
        "bn1_m": rnd(ks[6], (H1,)), "bn1_v": 0.5 + jnp.abs(rnd(ks[7], (H1,))),
        "w2": rnd(ks[8], (H2, H1)), "b2": rnd(ks[9], (H2,)),
        "bn2_g": 1.0 + rnd(ks[10], (H2,)), "bn2_b": rnd(ks[11], (H2,)),
        "bn2_m": rnd(ks[12], (H2,)), "bn2_v": 0.5 + jnp.abs(rnd(ks[13], (H2,))),
        "w3": rnd(ks[14], (H3, H2)), "b3": jnp.zeros((H3,), jnp.float32),
        "w4": rnd(ks[15], (OUT, H3)), "b4": jnp.zeros((OUT,), jnp.float32),
    }

    x = jax.random.normal(ks[16], (N, 1, H_in, W_in), dtype=jnp.float32)

    ref = dqn_conv_reference(x, params, n_agents)

    fwd = jax.jit(dqn_conv_forward, static_argnames=("out_features",
                                                     "block_rows"))

    # f32-operand path: exact structural parity with the reference at 1e-4.
    folded_f32 = prepare_params(params, n_agents, dot_dtype=jnp.float32)
    out_f32 = jax.block_until_ready(fwd(x, folded_f32, out_features=OUT))
    np.testing.assert_allclose(np.asarray(out_f32), np.asarray(ref),
                               rtol=1e-4, atol=1e-4)

    # bf16-operand / f32-accumulate path (MXU-native, recommended perf config);
    # re-validated at a bf16-appropriate tolerance per the review.
    folded_bf16 = prepare_params(params, n_agents, dot_dtype=jnp.bfloat16)
    out_bf16 = jax.block_until_ready(fwd(x, folded_bf16, out_features=OUT))
    np.testing.assert_allclose(np.asarray(out_bf16), np.asarray(ref),
                               rtol=2e-2, atol=1e-2)

    assert out_bf16.shape == (N, OUT) and out_bf16.dtype == jnp.float32
    print("KERNEL_OK")
</pallas_src>

<mosaic_0001>
module attributes {stable_mosaic.version = 11 : i64} {
  func.func @fused_dqn_kernel(%arg0: i32, %arg1: memref<8x128xf32, #tpu.memory_space<vmem>>, %arg2: memref<128x128xf32, #tpu.memory_space<vmem>>, %arg3: memref<3x128x128xf32, #tpu.memory_space<vmem>>, %arg4: memref<8x128xf32, #tpu.memory_space<vmem>>, %arg5: memref<8x128xf32, #tpu.memory_space<vmem>>) attributes {dimension_semantics = [#tpu.dimension_semantics<parallel>], iteration_bounds = array<i64: 1>, scalar_prefetch = 0 : i64, scratch_operands = 0 : i64, tpu.core_type = #tpu.core_type<tc>, window_params = [{transform_indices = @transform_0, window_bounds = array<i64: 8, 128>}, {pipeline_mode = #tpu.pipeline_mode<synchronous>, transform_indices = @transform_1, window_bounds = array<i64: 128, 128>}, {pipeline_mode = #tpu.pipeline_mode<synchronous>, transform_indices = @transform_2, window_bounds = array<i64: 3, 128, 128>}, {pipeline_mode = #tpu.pipeline_mode<synchronous>, transform_indices = @transform_3, window_bounds = array<i64: 8, 128>}, {transform_indices = @transform_4, window_bounds = array<i64: 8, 128>}]} {
    %c0 = arith.constant 0 : index
    %c0_0 = arith.constant 0 : index
    %0 = vector.load %arg4[%c0, %c0_0] : memref<8x128xf32, #tpu.memory_space<vmem>>, vector<8x128xf32>
    %c0_1 = arith.constant 0 : index
    %c0_2 = arith.constant 0 : index
    %1 = vector.load %arg1[%c0_1, %c0_2] : memref<8x128xf32, #tpu.memory_space<vmem>>, vector<8x128xf32>
    %c0_3 = arith.constant 0 : index
    %c0_4 = arith.constant 0 : index
    %2 = vector.load %arg2[%c0_3, %c0_4] : memref<128x128xf32, #tpu.memory_space<vmem>>, vector<128x128xf32>
    %cst = arith.constant dense<0.000000e+00> : vector<8x128xf32>
    %3 = tpu.matmul %1, %2, %cst {dimension_numbers = #tpu.dot_dimension_numbers<[1], [0], [0], [1], [0, 0, 1, 1], [], []>, precision = #tpu.contract_precision<fp32>} : vector<8x128xf32>, vector<128x128xf32>, vector<8x128xf32> -> vector<8x128xf32>
    %4 = vector.extract_strided_slice %0 {offsets = [0, 0], sizes = [1, 128], strides = [1, 1]} : vector<8x128xf32> to vector<1x128xf32>
    %5 = vector.broadcast %4 : vector<1x128xf32> to vector<8x128xf32>
    %6 = arith.mulf %3, %5 : vector<8x128xf32>
    %7 = vector.extract_strided_slice %0 {offsets = [1, 0], sizes = [1, 128], strides = [1, 1]} : vector<8x128xf32> to vector<1x128xf32>
    %8 = vector.broadcast %7 : vector<1x128xf32> to vector<8x128xf32>
    %9 = arith.addf %6, %8 : vector<8x128xf32>
    %cst_5 = arith.constant 0.000000e+00 : f32
    %10 = vector.broadcast %cst_5 : f32 to vector<8x128xf32>
    %11 = arith.maximumf %9, %10 : vector<8x128xf32>
    %c0_6 = arith.constant 0 : index
    %c0_7 = arith.constant 0 : index
    %c0_8 = arith.constant 0 : index
    %12 = vector.load %arg3[%c0_6, %c0_7, %c0_8] : memref<3x128x128xf32, #tpu.memory_space<vmem>>, vector<1x128x128xf32>
    %13 = vector.shape_cast %12 : vector<1x128x128xf32> to vector<128x128xf32>
    %cst_9 = arith.constant dense<0.000000e+00> : vector<8x128xf32>
    %14 = tpu.matmul %11, %13, %cst_9 {dimension_numbers = #tpu.dot_dimension_numbers<[1], [0], [0], [1], [0, 0, 1, 1], [], []>, precision = #tpu.contract_precision<fp32>} : vector<8x128xf32>, vector<128x128xf32>, vector<8x128xf32> -> vector<8x128xf32>
    %15 = vector.extract_strided_slice %0 {offsets = [2, 0], sizes = [1, 128], strides = [1, 1]} : vector<8x128xf32> to vector<1x128xf32>
    %16 = vector.broadcast %15 : vector<1x128xf32> to vector<8x128xf32>
    %17 = arith.mulf %14, %16 : vector<8x128xf32>
    %18 = vector.extract_strided_slice %0 {offsets = [3, 0], sizes = [1, 128], strides = [1, 1]} : vector<8x128xf32> to vector<1x128xf32>
    %19 = vector.broadcast %18 : vector<1x128xf32> to vector<8x128xf32>
    %20 = arith.addf %17, %19 : vector<8x128xf32>
    %cst_10 = arith.constant 0.000000e+00 : f32
    %21 = vector.broadcast %cst_10 : f32 to vector<8x128xf32>
    %22 = arith.maximumf %20, %21 : vector<8x128xf32>
    %c1 = arith.constant 1 : index
    %c0_11 = arith.constant 0 : index
    %c0_12 = arith.constant 0 : index
    %23 = vector.load %arg3[%c1, %c0_11, %c0_12] : memref<3x128x128xf32, #tpu.memory_space<vmem>>, vector<1x128x128xf32>
    %24 = vector.shape_cast %23 : vector<1x128x128xf32> to vector<128x128xf32>
    %cst_13 = arith.constant dense<0.000000e+00> : vector<8x128xf32>
    %25 = tpu.matmul %22, %24, %cst_13 {dimension_numbers = #tpu.dot_dimension_numbers<[1], [0], [0], [1], [0, 0, 1, 1], [], []>, precision = #tpu.contract_precision<fp32>} : vector<8x128xf32>, vector<128x128xf32>, vector<8x128xf32> -> vector<8x128xf32>
    %26 = vector.extract_strided_slice %0 {offsets = [4, 0], sizes = [1, 128], strides = [1, 1]} : vector<8x128xf32> to vector<1x128xf32>
    %27 = vector.broadcast %26 : vector<1x128xf32> to vector<8x128xf32>
    %28 = arith.addf %25, %27 : vector<8x128xf32>
    %cst_14 = arith.constant 0.000000e+00 : f32
    %29 = vector.broadcast %cst_14 : f32 to vector<8x128xf32>
    %30 = arith.maximumf %28, %29 : vector<8x128xf32>
    %c2 = arith.constant 2 : index
    %c0_15 = arith.constant 0 : index
    %c0_16 = arith.constant 0 : index
    %31 = vector.load %arg3[%c2, %c0_15, %c0_16] : memref<3x128x128xf32, #tpu.memory_space<vmem>>, vector<1x128x128xf32>
    %32 = vector.shape_cast %31 : vector<1x128x128xf32> to vector<128x128xf32>
    %cst_17 = arith.constant dense<0.000000e+00> : vector<8x128xf32>
    %33 = tpu.matmul %30, %32, %cst_17 {dimension_numbers = #tpu.dot_dimension_numbers<[1], [0], [0], [1], [0, 0, 1, 1], [], []>, precision = #tpu.contract_precision<fp32>} : vector<8x128xf32>, vector<128x128xf32>, vector<8x128xf32> -> vector<8x128xf32>
    %34 = vector.extract_strided_slice %0 {offsets = [5, 0], sizes = [1, 128], strides = [1, 1]} : vector<8x128xf32> to vector<1x128xf32>
    %35 = vector.broadcast %34 : vector<1x128xf32> to vector<8x128xf32>
    %36 = arith.addf %33, %35 : vector<8x128xf32>
    %c0_18 = arith.constant 0 : index
    %c0_19 = arith.constant 0 : index
    %37 = vector.load %arg5[%c0_18, %c0_19] : memref<8x128xf32, #tpu.memory_space<vmem>>, vector<8x128xf32>
    tpu.vector_store %arg5[%c0_18, %c0_19], %36 {strides = array<i32>} : memref<8x128xf32, #tpu.memory_space<vmem>>, vector<8x128xf32>,
    return
  }
  func.func @transform_0(%arg0: i32) -> (i32, i32) {
    %c0_i32 = arith.constant 0 : i32
    %c0_i32_0 = arith.constant 0 : i32
    return %arg0, %c0_i32 : i32, i32
  }
  func.func @transform_1(%arg0: i32) -> (i32, i32) {
    %c0_i32 = arith.constant 0 : i32
    %c0_i32_0 = arith.constant 0 : i32
    %c0_i32_1 = arith.constant 0 : i32
    return %c0_i32, %c0_i32_0 : i32, i32
  }
  func.func @transform_2(%arg0: i32) -> (i32, i32, i32) {
    %c0_i32 = arith.constant 0 : i32
    %c0_i32_0 = arith.constant 0 : i32
    %c0_i32_1 = arith.constant 0 : i32
    %c0_i32_2 = arith.constant 0 : i32
    return %c0_i32, %c0_i32_0, %c0_i32_1 : i32, i32, i32
  }
  func.func @transform_3(%arg0: i32) -> (i32, i32) {
    %c0_i32 = arith.constant 0 : i32
    %c0_i32_0 = arith.constant 0 : i32
    %c0_i32_1 = arith.constant 0 : i32
    return %c0_i32, %c0_i32_0 : i32, i32
  }
  func.func @transform_4(%arg0: i32) -> (i32, i32) {
    %c0_i32 = arith.constant 0 : i32
    %c0_i32_0 = arith.constant 0 : i32
    return %arg0, %c0_i32 : i32, i32
  }
}

</mosaic_0001>

<llo_original>
// kernel: dqn_conv_forward.1
$region0: #{dqn_conv_forward.1}
  #allocation0 [shape = 'u32[]', space=smem, size = 0x4, offset = 0x4, fixed_abs, tag = 'smem constant byte address 0x4 - core index']
  #allocation1 [shape = 'u32[72,128]{1,0:T(1,128)}', space=vmem, size = 0x9000, scoped, tag = 'internal scratch']
  %s0 = inlined_call_operand.vmem [shape: f32[8,128], index: 0, kind: input, shape index: {}]
  %s1 = inlined_call_operand.hbm [shape: f32[128,128], index: 1, kind: input, shape index: {}]
  %s2 = inlined_call_operand.hbm [shape: f32[3,128,128], index: 2, kind: input, shape index: {}]
  %s3 = inlined_call_operand.vmem [shape: f32[8,128], index: 3, kind: input, shape index: {}]
  %s4 = inlined_call_operand.vmem [shape: f32[8,128], index: 4, kind: output, shape index: {}]
  %s5 = sld [smem:[#allocation0]]
  $region34: #{dqn_conv_forward.1} parent=0
    _
  %s7 = ssub.s32 1, %s5
  %s8 = scalar_select 0, %s7, %s5
  $region1: #{dqn_conv_forward.1} parent=0
    #allocation2 [shape = 'u8[65536]{0}', space=vmem, size = 0x10000, scoped, tag = 'input window, operand 1, single buffered']
    #allocation3 [shape = 's32[1]{0}', space=sflag, size = 0x4, scoped, tag = 'scoped memory for dqn_conv_forward.1']
    #allocation4 [shape = 'u8[196608]{0}', space=vmem, size = 0x30000, scoped, tag = 'input window, operand 2, single buffered']
    #allocation5 [shape = 's32[1]{0}', space=sflag, size = 0x4, scoped, tag = 'scoped memory for dqn_conv_forward.1']
    %9 = vsyncpa [#allocation3], 0
    %10 = vsyncpa [#allocation5], 0
    // Predicated region
    $region2: #{dqn_conv_forward.1} parent=1 // pred_check
      _
    $region3: #{dqn_conv_forward.1} parent=1 // pred_check_branch
      %12 = sbr.rel (0) target = $region5
    $region4: #{dqn_conv_forward.1} parent=1 // pred_region
      _
    $region5: #{dqn_conv_forward.1} parent=1 // pred_fallthru
      _
    // Predicated region
    $region6: #{dqn_conv_forward.1} parent=1 // pred_check
      _
    $region7: #{dqn_conv_forward.1} parent=1 // pred_check_branch
      %14 = sbr.rel (0) target = $region9
    $region8: #{dqn_conv_forward.1} parent=1 // pred_region
      %16 = vsyncadd [#allocation3], 0
      %s17 = sshll.u32 %s1, 4
      %s18 = int_to_ptr.hbm [resolvable:$true] %s17
      %s19 = sshll.u32 [#allocation2], 4
      %s20 = int_to_ptr.vmem [resolvable:$true] %s19
      %25 = dma.hbm_to_vmem [thread:$0]  %s18, 2048, %s20, [#allocation3], 128, 128, 8
    $region9: #{dqn_conv_forward.1} parent=1 // pred_fallthru
      _
    // Predicated region
    $region10: #{dqn_conv_forward.1} parent=1 // pred_check
      _
    $region11: #{dqn_conv_forward.1} parent=1 // pred_check_branch
      %27 = sbr.rel (0) target = $region13
    $region12: #{dqn_conv_forward.1} parent=1 // pred_region
      %29 = vsyncadd [#allocation5], 0
      %s30 = sshll.u32 %s2, 4
      %s31 = int_to_ptr.hbm [resolvable:$true] %s30
      %s32 = sshll.u32 [#allocation4], 4
      %s33 = int_to_ptr.vmem [resolvable:$true] %s32
      %38 = dma.hbm_to_vmem [thread:$0]  %s31, 6144, %s33, [#allocation5], 128, 128, 8
    $region13: #{dqn_conv_forward.1} parent=1 // pred_fallthru
      _
    // Predicated region
    $region14: #{dqn_conv_forward.1} parent=1 // pred_check
      _
    $region15: #{dqn_conv_forward.1} parent=1 // pred_check_branch
      %40 = sbr.rel (0) target = $region17
    $region16: #{dqn_conv_forward.1} parent=1 // pred_region
      _
    $region17: #{dqn_conv_forward.1} parent=1 // pred_fallthru
      _
    // Predicated region
    $region18: #{dqn_conv_forward.1} parent=1 // pred_check
      _
    $region19: #{dqn_conv_forward.1} parent=1 // pred_check_branch
      %42 = sbr.rel (0) target = $region21
    $region20: #{dqn_conv_forward.1} parent=1 // pred_region
      %44 = dma.done [#allocation3], 2048
    $region21: #{dqn_conv_forward.1} parent=1 // pred_fallthru
      _
    // Predicated region
    $region22: #{dqn_conv_forward.1} parent=1 // pred_check
      _
    $region23: #{dqn_conv_forward.1} parent=1 // pred_check_branch
      %46 = sbr.rel (0) target = $region25
    $region24: #{dqn_conv_forward.1} parent=1 // pred_region
      %48 = dma.done [#allocation5], 6144
    $region25: #{dqn_conv_forward.1} parent=1 // pred_fallthru
      _
    %v49 = vld [vmem:[%s3] sm:$0xff]
    %v50 = vld [vmem:[%s0] sm:$0xff]
    %v51 = vld [vmem:[#allocation2] sm:$0xff]
    %v52 = vld [vmem:[#allocation2 + $0x8] sm:$0xff]
    %v53 = vld [vmem:[#allocation2 + $0x10] sm:$0xff]
    %v54 = vld [vmem:[#allocation2 + $0x18] sm:$0xff]
    %v55 = vld [vmem:[#allocation2 + $0x20] sm:$0xff]
    %v56 = vld [vmem:[#allocation2 + $0x28] sm:$0xff]
    %v57 = vld [vmem:[#allocation2 + $0x30] sm:$0xff]
    %v58 = vld [vmem:[#allocation2 + $0x38] sm:$0xff]
    %v59 = vld [vmem:[#allocation2 + $0x40] sm:$0xff]
    %v60 = vld [vmem:[#allocation2 + $0x48] sm:$0xff]
    %v61 = vld [vmem:[#allocation2 + $0x50] sm:$0xff]
    %v62 = vld [vmem:[#allocation2 + $0x58] sm:$0xff]
    %v63 = vld [vmem:[#allocation2 + $0x60] sm:$0xff]
    %v64 = vld [vmem:[#allocation2 + $0x68] sm:$0xff]
    %v65 = vld [vmem:[#allocation2 + $0x70] sm:$0xff]
    %v66 = vld [vmem:[#allocation2 + $0x78] sm:$0xff]
    %v67 = vand.u32 %v66, 4294901760
    %68 = vmatpush.msra.mxu0 %v67
    %v69 = vand.u32 %v65, 4294901760
    %70 = vmatpush.msra.mxu0 %v69
    %v71 = vand.u32 %v64, 4294901760
    %72 = vmatpush.msra.mxu0 %v71
    %v73 = vand.u32 %v63, 4294901760
    %74 = vmatpush.msra.mxu0 %v73
    %v75 = vand.u32 %v62, 4294901760
    %76 = vmatpush.msra.mxu0 %v75
    %v77 = vand.u32 %v61, 4294901760
    %78 = vmatpush.msra.mxu0 %v77
    %v79 = vand.u32 %v60, 4294901760
    %80 = vmatpush.msra.mxu0 %v79
    %v81 = vand.u32 %v59, 4294901760
    %82 = vmatpush.msra.mxu0 %v81
    %v83 = vand.u32 %v58, 4294901760
    %84 = vmatpush.msra.mxu0 %v83
    %v85 = vand.u32 %v57, 4294901760
    %86 = vmatpush.msra.mxu0 %v85
    %v87 = vand.u32 %v56, 4294901760
    %88 = vmatpush.msra.mxu0 %v87
    %v89 = vand.u32 %v55, 4294901760
    %90 = vmatpush.msra.mxu0 %v89
    %v91 = vand.u32 %v54, 4294901760
    %92 = vmatpush.msra.mxu0 %v91
    %v93 = vand.u32 %v53, 4294901760
    %94 = vmatpush.msra.mxu0 %v93
    %v95 = vand.u32 %v52, 4294901760
    %96 = vmatpush.msra.mxu0 %v95
    %v97 = vand.u32 %v51, 4294901760
    %98 = vmatpush.msra.mxu0 %v97
    %v99 = vand.u32 %v50, 4294901760
    %v100 = vsub.f32 %v50, %v99
    %v101 = vand.u32 %v100, 4294901760
    %v102 = vsub.f32 %v100, %v101
    %v103 = vand.u32 %v102, 4294901760
    %104 = vmatmul.f32.gmra.mxu0 %v103
    %v105 = vpop.f32.mrf.mxu0
    %v106 = vadd.f32 0.0, %v105
    %107 = vdwg.mxu0
    %v108 = vand.u32 %v66, 4294901760
    %v109 = vsub.f32 %v66, %v108
    %v110 = vand.u32 %v109, 4294901760
    %v111 = vsub.f32 %v109, %v110
    %v112 = vand.u32 %v111, 4294901760
    %113 = vmatpush.msra.mxu0 %v112
    %v114 = vand.u32 %v65, 4294901760
    %v115 = vsub.f32 %v65, %v114
    %v116 = vand.u32 %v115, 4294901760
    %v117 = vsub.f32 %v115, %v116
    %v118 = vand.u32 %v117, 4294901760
    %119 = vmatpush.msra.mxu0 %v118
    %v120 = vand.u32 %v64, 4294901760
    %v121 = vsub.f32 %v64, %v120
    %v122 = vand.u32 %v121, 4294901760
    %v123 = vsub.f32 %v121, %v122
    %v124 = vand.u32 %v123, 4294901760
    %125 = vmatpush.msra.mxu0 %v124
    %v126 = vand.u32 %v63, 4294901760
    %v127 = vsub.f32 %v63, %v126
    %v128 = vand.u32 %v127, 4294901760
    %v129 = vsub.f32 %v127, %v128
    %v130 = vand.u32 %v129, 4294901760
    %131 = vmatpush.msra.mxu0 %v130
    %v132 = vand.u32 %v62, 4294901760
    %v133 = vsub.f32 %v62, %v132
    %v134 = vand.u32 %v133, 4294901760
    %v135 = vsub.f32 %v133, %v134
    %v136 = vand.u32 %v135, 4294901760
    %137 = vmatpush.msra.mxu0 %v136
    %v138 = vand.u32 %v61, 4294901760
    %v139 = vsub.f32 %v61, %v138
    %v140 = vand.u32 %v139, 4294901760
    %v141 = vsub.f32 %v139, %v140
    %v142 = vand.u32 %v141, 4294901760
    %143 = vmatpush.msra.mxu0 %v142
    %v144 = vand.u32 %v60, 4294901760
    %v145 = vsub.f32 %v60, %v144
    %v146 = vand.u32 %v145, 4294901760
    %v147 = vsub.f32 %v145, %v146
    %v148 = vand.u32 %v147, 4294901760
    %149 = vmatpush.msra.mxu0 %v148
    %v150 = vand.u32 %v59, 4294901760
    %v151 = vsub.f32 %v59, %v150
    %v152 = vand.u32 %v151, 4294901760
    %v153 = vsub.f32 %v151, %v152
    %v154 = vand.u32 %v153, 4294901760
    %155 = vmatpush.msra.mxu0 %v154
    %v156 = vand.u32 %v58, 4294901760
    %v157 = vsub.f32 %v58, %v156
    %v158 = vand.u32 %v157, 4294901760
    %v159 = vsub.f32 %v157, %v158
    %v160 = vand.u32 %v159, 4294901760
    %161 = vmatpush.msra.mxu0 %v160
    %v162 = vand.u32 %v57, 4294901760
    %v163 = vsub.f32 %v57, %v162
    %v164 = vand.u32 %v163, 4294901760
    %v165 = vsub.f32 %v163, %v164
    %v166 = vand.u32 %v165, 4294901760
    %167 = vmatpush.msra.mxu0 %v166
    %v168 = vand.u32 %v56, 4294901760
    %v169 = vsub.f32 %v56, %v168
    %v170 = vand.u32 %v169, 4294901760
    %v171 = vsub.f32 %v169, %v170
    %v172 = vand.u32 %v171, 4294901760
    %173 = vmatpush.msra.mxu0 %v172
    %v174 = vand.u32 %v55, 4294901760
    %v175 = vsub.f32 %v55, %v174
    %v176 = vand.u32 %v175, 4294901760
    %v177 = vsub.f32 %v175, %v176
    %v178 = vand.u32 %v177, 4294901760
    %179 = vmatpush.msra.mxu0 %v178
    %v180 = vand.u32 %v54, 4294901760
    %v181 = vsub.f32 %v54, %v180
    %v182 = vand.u32 %v181, 4294901760
    %v183 = vsub.f32 %v181, %v182
    %v184 = vand.u32 %v183, 4294901760
    %185 = vmatpush.msra.mxu0 %v184
    %v186 = vand.u32 %v53, 4294901760
    %v187 = vsub.f32 %v53, %v186
    %v188 = vand.u32 %v187, 4294901760
    %v189 = vsub.f32 %v187, %v188
    %v190 = vand.u32 %v189, 4294901760
    %191 = vmatpush.msra.mxu0 %v190
    %v192 = vand.u32 %v52, 4294901760
    %v193 = vsub.f32 %v52, %v192
    %v194 = vand.u32 %v193, 4294901760
    %v195 = vsub.f32 %v193, %v194
    %v196 = vand.u32 %v195, 4294901760
    %197 = vmatpush.msra.mxu0 %v196
    %v198 = vand.u32 %v51, 4294901760
    %v199 = vsub.f32 %v51, %v198
    %v200 = vand.u32 %v199, 4294901760
    %v201 = vsub.f32 %v199, %v200
    %v202 = vand.u32 %v201, 4294901760
    %203 = vmatpush.msra.mxu0 %v202
    %v204 = vand.u32 %v50, 4294901760
    %205 = vmatmul.f32.gmra.mxu0 %v204
    %v206 = vpop.f32.mrf.mxu0
    %v207 = vadd.f32 %v106, %v206
    %208 = vdwg.mxu0
    %v209 = vand.u32 %v66, 4294901760
    %v210 = vsub.f32 %v66, %v209
    %211 = vmatpush.msra.mxu0 %v210
    %v212 = vand.u32 %v65, 4294901760
    %v213 = vsub.f32 %v65, %v212
    %214 = vmatpush.msra.mxu0 %v213
    %v215 = vand.u32 %v64, 4294901760
    %v216 = vsub.f32 %v64, %v215
    %217 = vmatpush.msra.mxu0 %v216
    %v218 = vand.u32 %v63, 4294901760
    %v219 = vsub.f32 %v63, %v218
    %220 = vmatpush.msra.mxu0 %v219
    %v221 = vand.u32 %v62, 4294901760
    %v222 = vsub.f32 %v62, %v221
    %223 = vmatpush.msra.mxu0 %v222
    %v224 = vand.u32 %v61, 4294901760
    %v225 = vsub.f32 %v61, %v224
    %226 = vmatpush.msra.mxu0 %v225
    %v227 = vand.u32 %v60, 4294901760
    %v228 = vsub.f32 %v60, %v227
    %229 = vmatpush.msra.mxu0 %v228
    %v230 = vand.u32 %v59, 4294901760
    %v231 = vsub.f32 %v59, %v230
    %232 = vmatpush.msra.mxu0 %v231
    %v233 = vand.u32 %v58, 4294901760
    %v234 = vsub.f32 %v58, %v233
    %235 = vmatpush.msra.mxu0 %v234
    %v236 = vand.u32 %v57, 4294901760
    %v237 = vsub.f32 %v57, %v236
    %238 = vmatpush.msra.mxu0 %v237
    %v239 = vand.u32 %v56, 4294901760
    %v240 = vsub.f32 %v56, %v239
    %241 = vmatpush.msra.mxu0 %v240
    %v242 = vand.u32 %v55, 4294901760
    %v243 = vsub.f32 %v55, %v242
    %244 = vmatpush.msra.mxu0 %v243
    %v245 = vand.u32 %v54, 4294901760
    %v246 = vsub.f32 %v54, %v245
    %247 = vmatpush.msra.mxu0 %v246
    %v248 = vand.u32 %v53, 4294901760
    %v249 = vsub.f32 %v53, %v248
    %250 = vmatpush.msra.mxu0 %v249
    %v251 = vand.u32 %v52, 4294901760
    %v252 = vsub.f32 %v52, %v251
    %253 = vmatpush.msra.mxu0 %v252
    %v254 = vand.u32 %v51, 4294901760
    %v255 = vsub.f32 %v51, %v254
    %256 = vmatpush.msra.mxu0 %v255
    %v257 = vand.u32 %v50, 4294901760
    %v258 = vsub.f32 %v50, %v257
    %259 = vmatmul.f32.gmra.mxu0 %v258
    %v260 = vpop.f32.mrf.mxu0
    %v261 = vadd.f32 %v207, %v260
    %262 = vdwg.mxu0
    %v263 = vand.u32 %v66, 4294901760
    %264 = vmatpush.msra.mxu0 %v263
    %v265 = vand.u32 %v65, 4294901760
    %266 = vmatpush.msra.mxu0 %v265
    %v267 = vand.u32 %v64, 4294901760
    %268 = vmatpush.msra.mxu0 %v267
    %v269 = vand.u32 %v63, 4294901760
    %270 = vmatpush.msra.mxu0 %v269
    %v271 = vand.u32 %v62, 4294901760
    %272 = vmatpush.msra.mxu0 %v271
    %v273 = vand.u32 %v61, 4294901760
    %274 = vmatpush.msra.mxu0 %v273
    %v275 = vand.u32 %v60, 4294901760
    %276 = vmatpush.msra.mxu0 %v275
    %v277 = vand.u32 %v59, 4294901760
    %278 = vmatpush.msra.mxu0 %v277
    %v279 = vand.u32 %v58, 4294901760
    %280 = vmatpush.msra.mxu0 %v279
    %v281 = vand.u32 %v57, 4294901760
    %282 = vmatpush.msra.mxu0 %v281
    %v283 = vand.u32 %v56, 4294901760
    %284 = vmatpush.msra.mxu0 %v283
    %v285 = vand.u32 %v55, 4294901760
    %286 = vmatpush.msra.mxu0 %v285
    %v287 = vand.u32 %v54, 4294901760
    %288 = vmatpush.msra.mxu0 %v287
    %v289 = vand.u32 %v53, 4294901760
    %290 = vmatpush.msra.mxu0 %v289
    %v291 = vand.u32 %v52, 4294901760
    %292 = vmatpush.msra.mxu0 %v291
    %v293 = vand.u32 %v51, 4294901760
    %294 = vmatpush.msra.mxu0 %v293
    %v295 = vand.u32 %v50, 4294901760
    %v296 = vsub.f32 %v50, %v295
    %v297 = vand.u32 %v296, 4294901760
    %298 = vmatmul.f32.gmra.mxu0 %v297
    %v299 = vpop.f32.mrf.mxu0
    %v300 = vadd.f32 %v261, %v299
    %301 = vdwg.mxu0
    %v302 = vand.u32 %v66, 4294901760
    %v303 = vsub.f32 %v66, %v302
    %v304 = vand.u32 %v303, 4294901760
    %305 = vmatpush.msra.mxu0 %v304
    %v306 = vand.u32 %v65, 4294901760
    %v307 = vsub.f32 %v65, %v306
    %v308 = vand.u32 %v307, 4294901760
    %309 = vmatpush.msra.mxu0 %v308
    %v310 = vand.u32 %v64, 4294901760
    %v311 = vsub.f32 %v64, %v310
    %v312 = vand.u32 %v311, 4294901760
    %313 = vmatpush.msra.mxu0 %v312
    %v314 = vand.u32 %v63, 4294901760
    %v315 = vsub.f32 %v63, %v314
    %v316 = vand.u32 %v315, 4294901760
    %317 = vmatpush.msra.mxu0 %v316
    %v318 = vand.u32 %v62, 4294901760
    %v319 = vsub.f32 %v62, %v318
    %v320 = vand.u32 %v319, 4294901760
    %321 = vmatpush.msra.mxu0 %v320
    %v322 = vand.u32 %v61, 4294901760
    %v323 = vsub.f32 %v61, %v322
    %v324 = vand.u32 %v323, 4294901760
    %325 = vmatpush.msra.mxu0 %v324
    %v326 = vand.u32 %v60, 4294901760
    %v327 = vsub.f32 %v60, %v326
    %v328 = vand.u32 %v327, 4294901760
    %329 = vmatpush.msra.mxu0 %v328
    %v330 = vand.u32 %v59, 4294901760
    %v331 = vsub.f32 %v59, %v330
    %v332 = vand.u32 %v331, 4294901760
    %333 = vmatpush.msra.mxu0 %v332
    %v334 = vand.u32 %v58, 4294901760
    %v335 = vsub.f32 %v58, %v334
    %v336 = vand.u32 %v335, 4294901760
    %337 = vmatpush.msra.mxu0 %v336
    %v338 = vand.u32 %v57, 4294901760
    %v339 = vsub.f32 %v57, %v338
    %v340 = vand.u32 %v339, 4294901760
    %341 = vmatpush.msra.mxu0 %v340
    %v342 = vand.u32 %v56, 4294901760
    %v343 = vsub.f32 %v56, %v342
    %v344 = vand.u32 %v343, 4294901760
    %345 = vmatpush.msra.mxu0 %v344
    %v346 = vand.u32 %v55, 4294901760
    %v347 = vsub.f32 %v55, %v346
    %v348 = vand.u32 %v347, 4294901760
    %349 = vmatpush.msra.mxu0 %v348
    %v350 = vand.u32 %v54, 4294901760
    %v351 = vsub.f32 %v54, %v350
    %v352 = vand.u32 %v351, 4294901760
    %353 = vmatpush.msra.mxu0 %v352
    %v354 = vand.u32 %v53, 4294901760
    %v355 = vsub.f32 %v53, %v354
    %v356 = vand.u32 %v355, 4294901760
    %357 = vmatpush.msra.mxu0 %v356
    %v358 = vand.u32 %v52, 4294901760
    %v359 = vsub.f32 %v52, %v358
    %v360 = vand.u32 %v359, 4294901760
    %361 = vmatpush.msra.mxu0 %v360
    %v362 = vand.u32 %v51, 4294901760
    %v363 = vsub.f32 %v51, %v362
    %v364 = vand.u32 %v363, 4294901760
    %365 = vmatpush.msra.mxu0 %v364
    %v366 = vand.u32 %v50, 4294901760
    %367 = vmatmul.f32.gmra.mxu0 %v366
    %v368 = vpop.f32.mrf.mxu0
    %v369 = vadd.f32 %v300, %v368
    %370 = vdwg.mxu0
    %v371 = vand.u32 %v66, 4294901760
    %372 = vmatpush.msra.mxu0 %v371
    %v373 = vand.u32 %v65, 4294901760
    %374 = vmatpush.msra.mxu0 %v373
    %v375 = vand.u32 %v64, 4294901760
    %376 = vmatpush.msra.mxu0 %v375
    %v377 = vand.u32 %v63, 4294901760
    %378 = vmatpush.msra.mxu0 %v377
    %v379 = vand.u32 %v62, 4294901760
    %380 = vmatpush.msra.mxu0 %v379
    %v381 = vand.u32 %v61, 4294901760
    %382 = vmatpush.msra.mxu0 %v381
    %v383 = vand.u32 %v60, 4294901760
    %384 = vmatpush.msra.mxu0 %v383
    %v385 = vand.u32 %v59, 4294901760
    %386 = vmatpush.msra.mxu0 %v385
    %v387 = vand.u32 %v58, 4294901760
    %388 = vmatpush.msra.mxu0 %v387
    %v389 = vand.u32 %v57, 4294901760
    %390 = vmatpush.msra.mxu0 %v389
    %v391 = vand.u32 %v56, 4294901760
    %392 = vmatpush.msra.mxu0 %v391
    %v393 = vand.u32 %v55, 4294901760
    %394 = vmatpush.msra.mxu0 %v393
    %v395 = vand.u32 %v54, 4294901760
    %396 = vmatpush.msra.mxu0 %v395
    %v397 = vand.u32 %v53, 4294901760
    %398 = vmatpush.msra.mxu0 %v397
    %v399 = vand.u32 %v52, 4294901760
    %400 = vmatpush.msra.mxu0 %v399
    %v401 = vand.u32 %v51, 4294901760
    %402 = vmatpush.msra.mxu0 %v401
    %v403 = vand.u32 %v50, 4294901760
    %404 = vmatmul.f32.gmra.mxu0 %v403
    %v405 = vpop.f32.mrf.mxu0
    %v406 = vadd.f32 %v369, %v405
    %407 = vdwg.mxu0
    %v408 = vperm.slane %v49, 0
    %v409 = vmul.f32 %v406, %v408
    %v410 = vperm.slane %v49, 1
    %v411 = vadd.f32 %v409, %v410
    %v412 = vmax.f32 %v411, 0.0
    %v413 = vld [vmem:[#allocation4] sm:$0xff]
    %v414 = vld [vmem:[#allocation4 + $0x8] sm:$0xff]
    %v415 = vld [vmem:[#allocation4 + $0x10] sm:$0xff]
    %v416 = vld [vmem:[#allocation4 + $0x18] sm:$0xff]
    %v417 = vld [vmem:[#allocation4 + $0x20] sm:$0xff]
    %v418 = vld [vmem:[#allocation4 + $0x28] sm:$0xff]
    %v419 = vld [vmem:[#allocation4 + $0x30] sm:$0xff]
    %v420 = vld [vmem:[#allocation4 + $0x38] sm:$0xff]
    %v421 = vld [vmem:[#allocation4 + $0x40] sm:$0xff]
    %v422 = vld [vmem:[#allocation4 + $0x48] sm:$0xff]
    %v423 = vld [vmem:[#allocation4 + $0x50] sm:$0xff]
    %v424 = vld [vmem:[#allocation4 + $0x58] sm:$0xff]
    %v425 = vld [vmem:[#allocation4 + $0x60] sm:$0xff]
    %v426 = vld [vmem:[#allocation4 + $0x68] sm:$0xff]
    %v427 = vld [vmem:[#allocation4 + $0x70] sm:$0xff]
    %v428 = vld [vmem:[#allocation4 + $0x78] sm:$0xff]
    %v429 = vand.u32 %v428, 4294901760
    %430 = vmatpush.msra.mxu0 %v429
    %v431 = vand.u32 %v427, 4294901760
    %432 = vmatpush.msra.mxu0 %v431
    %v433 = vand.u32 %v426, 4294901760
    %434 = vmatpush.msra.mxu0 %v433
    %v435 = vand.u32 %v425, 4294901760
    %436 = vmatpush.msra.mxu0 %v435
    %v437 = vand.u32 %v424, 4294901760
    %438 = vmatpush.msra.mxu0 %v437
    %v439 = vand.u32 %v423, 4294901760
    %440 = vmatpush.msra.mxu0 %v439
    %v441 = vand.u32 %v422, 4294901760
    %442 = vmatpush.msra.mxu0 %v441
    %v443 = vand.u32 %v421, 4294901760
    %444 = vmatpush.msra.mxu0 %v443
    %v445 = vand.u32 %v420, 4294901760
    %446 = vmatpush.msra.mxu0 %v445
    %v447 = vand.u32 %v419, 4294901760
    %448 = vmatpush.msra.mxu0 %v447
    %v449 = vand.u32 %v418, 4294901760
    %450 = vmatpush.msra.mxu0 %v449
    %v451 = vand.u32 %v417, 4294901760
    %452 = vmatpush.msra.mxu0 %v451
    %v453 = vand.u32 %v416, 4294901760
    %454 = vmatpush.msra.mxu0 %v453
    %v455 = vand.u32 %v415, 4294901760
    %456 = vmatpush.msra.mxu0 %v455
    %v457 = vand.u32 %v414, 4294901760
    %458 = vmatpush.msra.mxu0 %v457
    %v459 = vand.u32 %v413, 4294901760
    %460 = vmatpush.msra.mxu0 %v459
    %v461 = vand.u32 %v412, 4294901760
    %v462 = vsub.f32 %v412, %v461
    %v463 = vand.u32 %v462, 4294901760
    %v464 = vsub.f32 %v462, %v463
    %v465 = vand.u32 %v464, 4294901760
    %466 = vmatmul.f32.gmra.mxu0 %v465
    %v467 = vpop.f32.mrf.mxu0
    %v468 = vadd.f32 0.0, %v467
    %469 = vdwg.mxu0
    %v470 = vand.u32 %v428, 4294901760
    %v471 = vsub.f32 %v428, %v470
    %v472 = vand.u32 %v471, 4294901760
    %v473 = vsub.f32 %v471, %v472
    %v474 = vand.u32 %v473, 4294901760
    %475 = vmatpush.msra.mxu0 %v474
    %v476 = vand.u32 %v427, 4294901760
    %v477 = vsub.f32 %v427, %v476
    %v478 = vand.u32 %v477, 4294901760
    %v479 = vsub.f32 %v477, %v478
    %v480 = vand.u32 %v479, 4294901760
    %481 = vmatpush.msra.mxu0 %v480
    %v482 = vand.u32 %v426, 4294901760
    %v483 = vsub.f32 %v426, %v482
    %v484 = vand.u32 %v483, 4294901760
    %v485 = vsub.f32 %v483, %v484
    %v486 = vand.u32 %v485, 4294901760
    %487 = vmatpush.msra.mxu0 %v486
    %v488 = vand.u32 %v425, 4294901760
    %v489 = vsub.f32 %v425, %v488
    %v490 = vand.u32 %v489, 4294901760
    %v491 = vsub.f32 %v489, %v490
    %v492 = vand.u32 %v491, 4294901760
    %493 = vmatpush.msra.mxu0 %v492
    %v494 = vand.u32 %v424, 4294901760
    %v495 = vsub.f32 %v424, %v494
    %v496 = vand.u32 %v495, 4294901760
    %v497 = vsub.f32 %v495, %v496
    %v498 = vand.u32 %v497, 4294901760
    %499 = vmatpush.msra.mxu0 %v498
    %v500 = vand.u32 %v423, 4294901760
    %v501 = vsub.f32 %v423, %v500
    %v502 = vand.u32 %v501, 4294901760
    %v503 = vsub.f32 %v501, %v502
    %v504 = vand.u32 %v503, 4294901760
    %505 = vmatpush.msra.mxu0 %v504
    %v506 = vand.u32 %v422, 4294901760
    %v507 = vsub.f32 %v422, %v506
    %v508 = vand.u32 %v507, 4294901760
    %v509 = vsub.f32 %v507, %v508
    %v510 = vand.u32 %v509, 4294901760
    %511 = vmatpush.msra.mxu0 %v510
    %v512 = vand.u32 %v421, 4294901760
    %v513 = vsub.f32 %v421, %v512
    %v514 = vand.u32 %v513, 4294901760
    %v515 = vsub.f32 %v513, %v514
    %v516 = vand.u32 %v515, 4294901760
    %517 = vmatpush.msra.mxu0 %v516
    %v518 = vand.u32 %v420, 4294901760
    %v519 = vsub.f32 %v420, %v518
    %v520 = vand.u32 %v519, 4294901760
    %v521 = vsub.f32 %v519, %v520
    %v522 = vand.u32 %v521, 4294901760
    %523 = vmatpush.msra.mxu0 %v522
    %v524 = vand.u32 %v419, 4294901760
    %v525 = vsub.f32 %v419, %v524
    %v526 = vand.u32 %v525, 4294901760
    %v527 = vsub.f32 %v525, %v526
    %v528 = vand.u32 %v527, 4294901760
    %529 = vmatpush.msra.mxu0 %v528
    %v530 = vand.u32 %v418, 4294901760
    %v531 = vsub.f32 %v418, %v530
    %v532 = vand.u32 %v531, 4294901760
    %v533 = vsub.f32 %v531, %v532
    %v534 = vand.u32 %v533, 4294901760
    %535 = vmatpush.msra.mxu0 %v534
    %v536 = vand.u32 %v417, 4294901760
    %v537 = vsub.f32 %v417, %v536
    %v538 = vand.u32 %v537, 4294901760
    %v539 = vsub.f32 %v537, %v538
    %v540 = vand.u32 %v539, 4294901760
    %541 = vmatpush.msra.mxu0 %v540
    %v542 = vand.u32 %v416, 4294901760
    %v543 = vsub.f32 %v416, %v542
    %v544 = vand.u32 %v543, 4294901760
    %v545 = vsub.f32 %v543, %v544
    %v546 = vand.u32 %v545, 4294901760
    %547 = vmatpush.msra.mxu0 %v546
    %v548 = vand.u32 %v415, 4294901760
    %v549 = vsub.f32 %v415, %v548
    %v550 = vand.u32 %v549, 4294901760
    %v551 = vsub.f32 %v549, %v550
    %v552 = vand.u32 %v551, 4294901760
    %553 = vmatpush.msra.mxu0 %v552
    %v554 = vand.u32 %v414, 4294901760
    %v555 = vsub.f32 %v414, %v554
    %v556 = vand.u32 %v555, 4294901760
    %v557 = vsub.f32 %v555, %v556
    %v558 = vand.u32 %v557, 4294901760
    %559 = vmatpush.msra.mxu0 %v558
    %v560 = vand.u32 %v413, 4294901760
    %v561 = vsub.f32 %v413, %v560
    %v562 = vand.u32 %v561, 4294901760
    %v563 = vsub.f32 %v561, %v562
    %v564 = vand.u32 %v563, 4294901760
    %565 = vmatpush.msra.mxu0 %v564
    %v566 = vand.u32 %v412, 4294901760
    %567 = vmatmul.f32.gmra.mxu0 %v566
    %v568 = vpop.f32.mrf.mxu0
    %v569 = vadd.f32 %v468, %v568
    %570 = vdwg.mxu0
    %v571 = vand.u32 %v428, 4294901760
    %v572 = vsub.f32 %v428, %v571
    %573 = vmatpush.msra.mxu0 %v572
    %v574 = vand.u32 %v427, 4294901760
    %v575 = vsub.f32 %v427, %v574
    %576 = vmatpush.msra.mxu0 %v575
    %v577 = vand.u32 %v426, 4294901760
    %v578 = vsub.f32 %v426, %v577
    %579 = vmatpush.msra.mxu0 %v578
    %v580 = vand.u32 %v425, 4294901760
    %v581 = vsub.f32 %v425, %v580
    %582 = vmatpush.msra.mxu0 %v581
    %v583 = vand.u32 %v424, 4294901760
    %v584 = vsub.f32 %v424, %v583
    %585 = vmatpush.msra.mxu0 %v584
    %v586 = vand.u32 %v423, 4294901760
    %v587 = vsub.f32 %v423, %v586
    %588 = vmatpush.msra.mxu0 %v587
    %v589 = vand.u32 %v422, 4294901760
    %v590 = vsub.f32 %v422, %v589
    %591 = vmatpush.msra.mxu0 %v590
    %v592 = vand.u32 %v421, 4294901760
    %v593 = vsub.f32 %v421, %v592
    %594 = vmatpush.msra.mxu0 %v593
    %v595 = vand.u32 %v420, 4294901760
    %v596 = vsub.f32 %v420, %v595
    %597 = vmatpush.msra.mxu0 %v596
    %v598 = vand.u32 %v419, 4294901760
    %v599 = vsub.f32 %v419, %v598
    %600 = vmatpush.msra.mxu0 %v599
    %v601 = vand.u32 %v418, 4294901760
    %v602 = vsub.f32 %v418, %v601
    %603 = vmatpush.msra.mxu0 %v602
    %v604 = vand.u32 %v417, 4294901760
    %v605 = vsub.f32 %v417, %v604
    %606 = vmatpush.msra.mxu0 %v605
    %v607 = vand.u32 %v416, 4294901760
    %v608 = vsub.f32 %v416, %v607
    %609 = vmatpush.msra.mxu0 %v608
    %v610 = vand.u32 %v415, 4294901760
    %v611 = vsub.f32 %v415, %v610
    %612 = vmatpush.msra.mxu0 %v611
    %v613 = vand.u32 %v414, 4294901760
    %v614 = vsub.f32 %v414, %v613
    %615 = vmatpush.msra.mxu0 %v614
    %v616 = vand.u32 %v413, 4294901760
    %v617 = vsub.f32 %v413, %v616
    %618 = vmatpush.msra.mxu0 %v617
    %v619 = vand.u32 %v412, 4294901760
    %v620 = vsub.f32 %v412, %v619
    %621 = vmatmul.f32.gmra.mxu0 %v620
    %v622 = vpop.f32.mrf.mxu0
    %v623 = vadd.f32 %v569, %v622
    %624 = vdwg.mxu0
    %v625 = vand.u32 %v428, 4294901760
    %626 = vmatpush.msra.mxu0 %v625
    %v627 = vand.u32 %v427, 4294901760
    %628 = vmatpush.msra.mxu0 %v627
    %v629 = vand.u32 %v426, 4294901760
    %630 = vmatpush.msra.mxu0 %v629
    %v631 = vand.u32 %v425, 4294901760
    %632 = vmatpush.msra.mxu0 %v631
    %v633 = vand.u32 %v424, 4294901760
    %634 = vmatpush.msra.mxu0 %v633
    %v635 = vand.u32 %v423, 4294901760
    %636 = vmatpush.msra.mxu0 %v635
    %v637 = vand.u32 %v422, 4294901760
    %638 = vmatpush.msra.mxu0 %v637
    %v639 = vand.u32 %v421, 4294901760
    %640 = vmatpush.msra.mxu0 %v639
    %v641 = vand.u32 %v420, 4294901760
    %642 = vmatpush.msra.mxu0 %v641
    %v643 = vand.u32 %v419, 4294901760
    %644 = vmatpush.msra.mxu0 %v643
    %v645 = vand.u32 %v418, 4294901760
    %646 = vmatpush.msra.mxu0 %v645
    %v647 = vand.u32 %v417, 4294901760
    %648 = vmatpush.msra.mxu0 %v647
    %v649 = vand.u32 %v416, 4294901760
    %650 = vmatpush.msra.mxu0 %v649
    %v651 = vand.u32 %v415, 4294901760
    %652 = vmatpush.msra.mxu0 %v651
    %v653 = vand.u32 %v414, 4294901760
    %654 = vmatpush.msra.mxu0 %v653
    %v655 = vand.u32 %v413, 4294901760
    %656 = vmatpush.msra.mxu0 %v655
    %v657 = vand.u32 %v412, 4294901760
    %v658 = vsub.f32 %v412, %v657
    %v659 = vand.u32 %v658, 4294901760
    %660 = vmatmul.f32.gmra.mxu0 %v659
    %v661 = vpop.f32.mrf.mxu0
    %v662 = vadd.f32 %v623, %v661
    %663 = vdwg.mxu0
    %v664 = vand.u32 %v428, 4294901760
    %v665 = vsub.f32 %v428, %v664
    %v666 = vand.u32 %v665, 4294901760
    %667 = vmatpush.msra.mxu0 %v666
    %v668 = vand.u32 %v427, 4294901760
    %v669 = vsub.f32 %v427, %v668
    %v670 = vand.u32 %v669, 4294901760
    %671 = vmatpush.msra.mxu0 %v670
    %v672 = vand.u32 %v426, 4294901760
    %v673 = vsub.f32 %v426, %v672
    %v674 = vand.u32 %v673, 4294901760
    %675 = vmatpush.msra.mxu0 %v674
    %v676 = vand.u32 %v425, 4294901760
    %v677 = vsub.f32 %v425, %v676
    %v678 = vand.u32 %v677, 4294901760
    %679 = vmatpush.msra.mxu0 %v678
    %v680 = vand.u32 %v424, 4294901760
    %v681 = vsub.f32 %v424, %v680
    %v682 = vand.u32 %v681, 4294901760
    %683 = vmatpush.msra.mxu0 %v682
    %v684 = vand.u32 %v423, 4294901760
    %v685 = vsub.f32 %v423, %v684
    %v686 = vand.u32 %v685, 4294901760
    %687 = vmatpush.msra.mxu0 %v686
    %v688 = vand.u32 %v422, 4294901760
    %v689 = vsub.f32 %v422, %v688
    %v690 = vand.u32 %v689, 4294901760
    %691 = vmatpush.msra.mxu0 %v690
    %v692 = vand.u32 %v421, 4294901760
    %v693 = vsub.f32 %v421, %v692
    %v694 = vand.u32 %v693, 4294901760
    %695 = vmatpush.msra.mxu0 %v694
    %v696 = vand.u32 %v420, 4294901760
    %v697 = vsub.f32 %v420, %v696
    %v698 = vand.u32 %v697, 4294901760
    %699 = vmatpush.msra.mxu0 %v698
    %v700 = vand.u32 %v419, 4294901760
    %v701 = vsub.f32 %v419, %v700
    %v702 = vand.u32 %v701, 4294901760
    %703 = vmatpush.msra.mxu0 %v702
    %v704 = vand.u32 %v418, 4294901760
    %v705 = vsub.f32 %v418, %v704
    %v706 = vand.u32 %v705, 4294901760
    %707 = vmatpush.msra.mxu0 %v706
    %v708 = vand.u32 %v417, 4294901760
    %v709 = vsub.f32 %v417, %v708
    %v710 = vand.u32 %v709, 4294901760
    %711 = vmatpush.msra.mxu0 %v710
    %v712 = vand.u32 %v416, 4294901760
    %v713 = vsub.f32 %v416, %v712
    %v714 = vand.u32 %v713, 4294901760
    %715 = vmatpush.msra.mxu0 %v714
    %v716 = vand.u32 %v415, 4294901760
    %v717 = vsub.f32 %v415, %v716
    %v718 = vand.u32 %v717, 4294901760
    %719 = vmatpush.msra.mxu0 %v718
    %v720 = vand.u32 %v414, 4294901760
    %v721 = vsub.f32 %v414, %v720
    %v722 = vand.u32 %v721, 4294901760
    %723 = vmatpush.msra.mxu0 %v722
    %v724 = vand.u32 %v413, 4294901760
    %v725 = vsub.f32 %v413, %v724
    %v726 = vand.u32 %v725, 4294901760
    %727 = vmatpush.msra.mxu0 %v726
    %v728 = vand.u32 %v412, 4294901760
    %729 = vmatmul.f32.gmra.mxu0 %v728
    %v730 = vpop.f32.mrf.mxu0
    %v731 = vadd.f32 %v662, %v730
    %732 = vdwg.mxu0
    %v733 = vand.u32 %v428, 4294901760
    %734 = vmatpush.msra.mxu0 %v733
    %v735 = vand.u32 %v427, 4294901760
    %736 = vmatpush.msra.mxu0 %v735
    %v737 = vand.u32 %v426, 4294901760
    %738 = vmatpush.msra.mxu0 %v737
    %v739 = vand.u32 %v425, 4294901760
    %740 = vmatpush.msra.mxu0 %v739
    %v741 = vand.u32 %v424, 4294901760
    %742 = vmatpush.msra.mxu0 %v741
    %v743 = vand.u32 %v423, 4294901760
    %744 = vmatpush.msra.mxu0 %v743
    %v745 = vand.u32 %v422, 4294901760
    %746 = vmatpush.msra.mxu0 %v745
    %v747 = vand.u32 %v421, 4294901760
    %748 = vmatpush.msra.mxu0 %v747
    %v749 = vand.u32 %v420, 4294901760
    %750 = vmatpush.msra.mxu0 %v749
    %v751 = vand.u32 %v419, 4294901760
    %752 = vmatpush.msra.mxu0 %v751
    %v753 = vand.u32 %v418, 4294901760
    %754 = vmatpush.msra.mxu0 %v753
    %v755 = vand.u32 %v417, 4294901760
    %756 = vmatpush.msra.mxu0 %v755
    %v757 = vand.u32 %v416, 4294901760
    %758 = vmatpush.msra.mxu0 %v757
    %v759 = vand.u32 %v415, 4294901760
    %760 = vmatpush.msra.mxu0 %v759
    %v761 = vand.u32 %v414, 4294901760
    %762 = vmatpush.msra.mxu0 %v761
    %v763 = vand.u32 %v413, 4294901760
    %764 = vmatpush.msra.mxu0 %v763
    %v765 = vand.u32 %v412, 4294901760
    %766 = vmatmul.f32.gmra.mxu0 %v765
    %v767 = vpop.f32.mrf.mxu0
    %v768 = vadd.f32 %v731, %v767
    %769 = vdwg.mxu0
    %v770 = vperm.slane %v49, 2
    %v771 = vmul.f32 %v768, %v770
    %v772 = vperm.slane %v49, 3
    %v773 = vadd.f32 %v771, %v772
    %v774 = vmax.f32 %v773, 0.0
    %s775 = scalar_lea.vmem [#allocation4], 128
    %v776 = vld [vmem:[%s775] sm:$0xff]
    %v777 = vld [vmem:[%s775 + $0x8] sm:$0xff]
    %v778 = vld [vmem:[%s775 + $0x10] sm:$0xff]
    %v779 = vld [vmem:[%s775 + $0x18] sm:$0xff]
    %v780 = vld [vmem:[%s775 + $0x20] sm:$0xff]
    %v781 = vld [vmem:[%s775 + $0x28] sm:$0xff]
    %v782 = vld [vmem:[%s775 + $0x30] sm:$0xff]
    %v783 = vld [vmem:[%s775 + $0x38] sm:$0xff]
    %v784 = vld [vmem:[%s775 + $0x40] sm:$0xff]
    %v785 = vld [vmem:[%s775 + $0x48] sm:$0xff]
    %v786 = vld [vmem:[%s775 + $0x50] sm:$0xff]
    %v787 = vld [vmem:[%s775 + $0x58] sm:$0xff]
    %v788 = vld [vmem:[%s775 + $0x60] sm:$0xff]
    %v789 = vld [vmem:[%s775 + $0x68] sm:$0xff]
    %v790 = vld [vmem:[%s775 + $0x70] sm:$0xff]
    %v791 = vld [vmem:[%s775 + $0x78] sm:$0xff]
    %v792 = vperm.slane %v49, 4
    %v793 = vand.u32 %v791, 4294901760
    %794 = vmatpush.msra.mxu0 %v793
    %v795 = vand.u32 %v790, 4294901760
    %796 = vmatpush.msra.mxu0 %v795
    %v797 = vand.u32 %v789, 4294901760
    %798 = vmatpush.msra.mxu0 %v797
    %v799 = vand.u32 %v788, 4294901760
    %800 = vmatpush.msra.mxu0 %v799
    %v801 = vand.u32 %v787, 4294901760
    %802 = vmatpush.msra.mxu0 %v801
    %v803 = vand.u32 %v786, 4294901760
    %804 = vmatpush.msra.mxu0 %v803
    %v805 = vand.u32 %v785, 4294901760
    %806 = vmatpush.msra.mxu0 %v805
    %v807 = vand.u32 %v784, 4294901760
    %808 = vmatpush.msra.mxu0 %v807
    %v809 = vand.u32 %v783, 4294901760
    %810 = vmatpush.msra.mxu0 %v809
    %v811 = vand.u32 %v782, 4294901760
    %812 = vmatpush.msra.mxu0 %v811
    %v813 = vand.u32 %v781, 4294901760
    %814 = vmatpush.msra.mxu0 %v813
    %v815 = vand.u32 %v780, 4294901760
    %816 = vmatpush.msra.mxu0 %v815
    %v817 = vand.u32 %v779, 4294901760
    %818 = vmatpush.msra.mxu0 %v817
    %v819 = vand.u32 %v778, 4294901760
    %820 = vmatpush.msra.mxu0 %v819
    %v821 = vand.u32 %v777, 4294901760
    %822 = vmatpush.msra.mxu0 %v821
    %v823 = vand.u32 %v776, 4294901760
    %824 = vmatpush.msra.mxu0 %v823
    %v825 = vand.u32 %v774, 4294901760
    %v826 = vsub.f32 %v774, %v825
    %v827 = vand.u32 %v826, 4294901760
    %v828 = vsub.f32 %v826, %v827
    %v829 = vand.u32 %v828, 4294901760
    %830 = vmatmul.f32.gmra.mxu0 %v829
    %v831 = vpop.f32.mrf.mxu0
    %v832 = vadd.f32 %v792, %v831
    %833 = vdwg.mxu0
    %v834 = vand.u32 %v791, 4294901760
    %v835 = vsub.f32 %v791, %v834
    %v836 = vand.u32 %v835, 4294901760
    %v837 = vsub.f32 %v835, %v836
    %v838 = vand.u32 %v837, 4294901760
    %839 = vmatpush.msra.mxu0 %v838
    %v840 = vand.u32 %v790, 4294901760
    %v841 = vsub.f32 %v790, %v840
    %v842 = vand.u32 %v841, 4294901760
    %v843 = vsub.f32 %v841, %v842
    %v844 = vand.u32 %v843, 4294901760
    %845 = vmatpush.msra.mxu0 %v844
    %v846 = vand.u32 %v789, 4294901760
    %v847 = vsub.f32 %v789, %v846
    %v848 = vand.u32 %v847, 4294901760
    %v849 = vsub.f32 %v847, %v848
    %v850 = vand.u32 %v849, 4294901760
    %851 = vmatpush.msra.mxu0 %v850
    %v852 = vand.u32 %v788, 4294901760
    %v853 = vsub.f32 %v788, %v852
    %v854 = vand.u32 %v853, 4294901760
    %v855 = vsub.f32 %v853, %v854
    %v856 = vand.u32 %v855, 4294901760
    %857 = vmatpush.msra.mxu0 %v856
    %v858 = vand.u32 %v787, 4294901760
    %v859 = vsub.f32 %v787, %v858
    %v860 = vand.u32 %v859, 4294901760
    %v861 = vsub.f32 %v859, %v860
    %v862 = vand.u32 %v861, 4294901760
    %863 = vmatpush.msra.mxu0 %v862
    %v864 = vand.u32 %v786, 4294901760
    %v865 = vsub.f32 %v786, %v864
    %v866 = vand.u32 %v865, 4294901760
    %v867 = vsub.f32 %v865, %v866
    %v868 = vand.u32 %v867, 4294901760
    %869 = vmatpush.msra.mxu0 %v868
    %v870 = vand.u32 %v785, 4294901760
    %v871 = vsub.f32 %v785, %v870
    %v872 = vand.u32 %v871, 4294901760
    %v873 = vsub.f32 %v871, %v872
    %v874 = vand.u32 %v873, 4294901760
    %875 = vmatpush.msra.mxu0 %v874
    %v876 = vand.u32 %v784, 4294901760
    %v877 = vsub.f32 %v784, %v876
    %v878 = vand.u32 %v877, 4294901760
    %v879 = vsub.f32 %v877, %v878
    %v880 = vand.u32 %v879, 4294901760
    %881 = vmatpush.msra.mxu0 %v880
    %v882 = vand.u32 %v783, 4294901760
    %v883 = vsub.f32 %v783, %v882
    %v884 = vand.u32 %v883, 4294901760
    %v885 = vsub.f32 %v883, %v884
    %v886 = vand.u32 %v885, 4294901760
    %887 = vmatpush.msra.mxu0 %v886
    %v888 = vand.u32 %v782, 4294901760
    %v889 = vsub.f32 %v782, %v888
    %v890 = vand.u32 %v889, 4294901760
    %v891 = vsub.f32 %v889, %v890
    %v892 = vand.u32 %v891, 4294901760
    %893 = vmatpush.msra.mxu0 %v892
    %v894 = vand.u32 %v781, 4294901760
    %v895 = vsub.f32 %v781, %v894
    %v896 = vand.u32 %v895, 4294901760
    %v897 = vsub.f32 %v895, %v896
    %v898 = vand.u32 %v897, 4294901760
    %899 = vmatpush.msra.mxu0 %v898
    %v900 = vand.u32 %v780, 4294901760
    %v901 = vsub.f32 %v780, %v900
    %v902 = vand.u32 %v901, 4294901760
    %v903 = vsub.f32 %v901, %v902
    %v904 = vand.u32 %v903, 4294901760
    %905 = vmatpush.msra.mxu0 %v904
    %v906 = vand.u32 %v779, 4294901760
    %v907 = vsub.f32 %v779, %v906
    %v908 = vand.u32 %v907, 4294901760
    %v909 = vsub.f32 %v907, %v908
    %v910 = vand.u32 %v909, 4294901760
    %911 = vmatpush.msra.mxu0 %v910
    %v912 = vand.u32 %v778, 4294901760
    %v913 = vsub.f32 %v778, %v912
    %v914 = vand.u32 %v913, 4294901760
    %v915 = vsub.f32 %v913, %v914
    %v916 = vand.u32 %v915, 4294901760
    %917 = vmatpush.msra.mxu0 %v916
    %v918 = vand.u32 %v777, 4294901760
    %v919 = vsub.f32 %v777, %v918
    %v920 = vand.u32 %v919, 4294901760
    %v921 = vsub.f32 %v919, %v920
    %v922 = vand.u32 %v921, 4294901760
    %923 = vmatpush.msra.mxu0 %v922
    %v924 = vand.u32 %v776, 4294901760
    %v925 = vsub.f32 %v776, %v924
    %v926 = vand.u32 %v925, 4294901760
    %v927 = vsub.f32 %v925, %v926
    %v928 = vand.u32 %v927, 4294901760
    %929 = vmatpush.msra.mxu0 %v928
    %v930 = vand.u32 %v774, 4294901760
    %931 = vmatmul.f32.gmra.mxu0 %v930
    %v932 = vpop.f32.mrf.mxu0
    %v933 = vadd.f32 %v832, %v932
    %934 = vdwg.mxu0
    %v935 = vand.u32 %v791, 4294901760
    %v936 = vsub.f32 %v791, %v935
    %937 = vmatpush.msra.mxu0 %v936
    %v938 = vand.u32 %v790, 4294901760
    %v939 = vsub.f32 %v790, %v938
    %940 = vmatpush.msra.mxu0 %v939
    %v941 = vand.u32 %v789, 4294901760
    %v942 = vsub.f32 %v789, %v941
    %943 = vmatpush.msra.mxu0 %v942
    %v944 = vand.u32 %v788, 4294901760
    %v945 = vsub.f32 %v788, %v944
    %946 = vmatpush.msra.mxu0 %v945
    %v947 = vand.u32 %v787, 4294901760
    %v948 = vsub.f32 %v787, %v947
    %949 = vmatpush.msra.mxu0 %v948
    %v950 = vand.u32 %v786, 4294901760
    %v951 = vsub.f32 %v786, %v950
    %952 = vmatpush.msra.mxu0 %v951
    %v953 = vand.u32 %v785, 4294901760
    %v954 = vsub.f32 %v785, %v953
    %955 = vmatpush.msra.mxu0 %v954
    %v956 = vand.u32 %v784, 4294901760
    %v957 = vsub.f32 %v784, %v956
    %958 = vmatpush.msra.mxu0 %v957
    %v959 = vand.u32 %v783, 4294901760
    %v960 = vsub.f32 %v783, %v959
    %961 = vmatpush.msra.mxu0 %v960
    %v962 = vand.u32 %v782, 4294901760
    %v963 = vsub.f32 %v782, %v962
    %964 = vmatpush.msra.mxu0 %v963
    %v965 = vand.u32 %v781, 4294901760
    %v966 = vsub.f32 %v781, %v965
    %967 = vmatpush.msra.mxu0 %v966
    %v968 = vand.u32 %v780, 4294901760
    %v969 = vsub.f32 %v780, %v968
    %970 = vmatpush.msra.mxu0 %v969
    %v971 = vand.u32 %v779, 4294901760
    %v972 = vsub.f32 %v779, %v971
    %973 = vmatpush.msra.mxu0 %v972
    %v974 = vand.u32 %v778, 4294901760
    %v975 = vsub.f32 %v778, %v974
    %976 = vmatpush.msra.mxu0 %v975
    %v977 = vand.u32 %v777, 4294901760
    %v978 = vsub.f32 %v777, %v977
    %979 = vmatpush.msra.mxu0 %v978
    %v980 = vand.u32 %v776, 4294901760
    %v981 = vsub.f32 %v776, %v980
    %982 = vmatpush.msra.mxu0 %v981
    %v983 = vand.u32 %v774, 4294901760
    %v984 = vsub.f32 %v774, %v983
    %985 = vmatmul.f32.gmra.mxu0 %v984
    %v986 = vpop.f32.mrf.mxu0
    %v987 = vadd.f32 %v933, %v986
    %988 = vdwg.mxu0
    %v989 = vand.u32 %v791, 4294901760
    %990 = vmatpush.msra.mxu0 %v989
    %v991 = vand.u32 %v790, 4294901760
    %992 = vmatpush.msra.mxu0 %v991
    %v993 = vand.u32 %v789, 4294901760
    %994 = vmatpush.msra.mxu0 %v993
    %v995 = vand.u32 %v788, 4294901760
    %996 = vmatpush.msra.mxu0 %v995
    %v997 = vand.u32 %v787, 4294901760
    %998 = vmatpush.msra.mxu0 %v997
    %v999 = vand.u32 %v786, 4294901760
    %1000 = vmatpush.msra.mxu0 %v999
    %v1001 = vand.u32 %v785, 4294901760
    %1002 = vmatpush.msra.mxu0 %v1001
    %v1003 = vand.u32 %v784, 4294901760
    %1004 = vmatpush.msra.mxu0 %v1003
    %v1005 = vand.u32 %v783, 4294901760
    %1006 = vmatpush.msra.mxu0 %v1005
    %v1007 = vand.u32 %v782, 4294901760
    %1008 = vmatpush.msra.mxu0 %v1007
    %v1009 = vand.u32 %v781, 4294901760
    %1010 = vmatpush.msra.mxu0 %v1009
    %v1011 = vand.u32 %v780, 4294901760
    %1012 = vmatpush.msra.mxu0 %v1011
    %v1013 = vand.u32 %v779, 4294901760
    %1014 = vmatpush.msra.mxu0 %v1013
    %v1015 = vand.u32 %v778, 4294901760
    %1016 = vmatpush.msra.mxu0 %v1015
    %v1017 = vand.u32 %v777, 4294901760
    %1018 = vmatpush.msra.mxu0 %v1017
    %v1019 = vand.u32 %v776, 4294901760
    %1020 = vmatpush.msra.mxu0 %v1019
    %v1021 = vand.u32 %v774, 4294901760
    %v1022 = vsub.f32 %v774, %v1021
    %v1023 = vand.u32 %v1022, 4294901760
    %1024 = vmatmul.f32.gmra.mxu0 %v1023
    %v1025 = vpop.f32.mrf.mxu0
    %v1026 = vadd.f32 %v987, %v1025
    %1027 = vdwg.mxu0
    %v1028 = vand.u32 %v791, 4294901760
    %v1029 = vsub.f32 %v791, %v1028
    %v1030 = vand.u32 %v1029, 4294901760
    %1031 = vmatpush.msra.mxu0 %v1030
    %v1032 = vand.u32 %v790, 4294901760
    %v1033 = vsub.f32 %v790, %v1032
    %v1034 = vand.u32 %v1033, 4294901760
    %1035 = vmatpush.msra.mxu0 %v1034
    %v1036 = vand.u32 %v789, 4294901760
    %v1037 = vsub.f32 %v789, %v1036
    %v1038 = vand.u32 %v1037, 4294901760
    %1039 = vmatpush.msra.mxu0 %v1038
    %v1040 = vand.u32 %v788, 4294901760
    %v1041 = vsub.f32 %v788, %v1040
    %v1042 = vand.u32 %v1041, 4294901760
    %1043 = vmatpush.msra.mxu0 %v1042
    %v1044 = vand.u32 %v787, 4294901760
    %v1045 = vsub.f32 %v787, %v1044
    %v1046 = vand.u32 %v1045, 4294901760
    %1047 = vmatpush.msra.mxu0 %v1046
    %v1048 = vand.u32 %v786, 4294901760
    %v1049 = vsub.f32 %v786, %v1048
    %v1050 = vand.u32 %v1049, 4294901760
    %1051 = vmatpush.msra.mxu0 %v1050
    %v1052 = vand.u32 %v785, 4294901760
    %v1053 = vsub.f32 %v785, %v1052
    %v1054 = vand.u32 %v1053, 4294901760
    %1055 = vmatpush.msra.mxu0 %v1054
    %v1056 = vand.u32 %v784, 4294901760
    %v1057 = vsub.f32 %v784, %v1056
    %v1058 = vand.u32 %v1057, 4294901760
    %1059 = vmatpush.msra.mxu0 %v1058
    %v1060 = vand.u32 %v783, 4294901760
    %v1061 = vsub.f32 %v783, %v1060
    %v1062 = vand.u32 %v1061, 4294901760
    %1063 = vmatpush.msra.mxu0 %v1062
    %v1064 = vand.u32 %v782, 4294901760
    %v1065 = vsub.f32 %v782, %v1064
    %v1066 = vand.u32 %v1065, 4294901760
    %1067 = vmatpush.msra.mxu0 %v1066
    %v1068 = vand.u32 %v781, 4294901760
    %v1069 = vsub.f32 %v781, %v1068
    %v1070 = vand.u32 %v1069, 4294901760
    %1071 = vmatpush.msra.mxu0 %v1070
    %v1072 = vand.u32 %v780, 4294901760
    %v1073 = vsub.f32 %v780, %v1072
    %v1074 = vand.u32 %v1073, 4294901760
    %1075 = vmatpush.msra.mxu0 %v1074
    %v1076 = vand.u32 %v779, 4294901760
    %v1077 = vsub.f32 %v779, %v1076
    %v1078 = vand.u32 %v1077, 4294901760
    %1079 = vmatpush.msra.mxu0 %v1078
    %v1080 = vand.u32 %v778, 4294901760
    %v1081 = vsub.f32 %v778, %v1080
    %v1082 = vand.u32 %v1081, 4294901760
    %1083 = vmatpush.msra.mxu0 %v1082
    %v1084 = vand.u32 %v777, 4294901760
    %v1085 = vsub.f32 %v777, %v1084
    %v1086 = vand.u32 %v1085, 4294901760
    %1087 = vmatpush.msra.mxu0 %v1086
    %v1088 = vand.u32 %v776, 4294901760
    %v1089 = vsub.f32 %v776, %v1088
    %v1090 = vand.u32 %v1089, 4294901760
    %1091 = vmatpush.msra.mxu0 %v1090
    %v1092 = vand.u32 %v774, 4294901760
    %1093 = vmatmul.f32.gmra.mxu0 %v1092
    %v1094 = vpop.f32.mrf.mxu0
    %v1095 = vadd.f32 %v1026, %v1094
    %1096 = vdwg.mxu0
    %v1097 = vand.u32 %v791, 4294901760
    %1098 = vmatpush.msra.mxu0 %v1097
    %v1099 = vand.u32 %v790, 4294901760
    %1100 = vmatpush.msra.mxu0 %v1099
    %v1101 = vand.u32 %v789, 4294901760
    %1102 = vmatpush.msra.mxu0 %v1101
    %v1103 = vand.u32 %v788, 4294901760
    %1104 = vmatpush.msra.mxu0 %v1103
    %v1105 = vand.u32 %v787, 4294901760
    %1106 = vmatpush.msra.mxu0 %v1105
    %v1107 = vand.u32 %v786, 4294901760
    %1108 = vmatpush.msra.mxu0 %v1107
    %v1109 = vand.u32 %v785, 4294901760
    %1110 = vmatpush.msra.mxu0 %v1109
    %v1111 = vand.u32 %v784, 4294901760
    %1112 = vmatpush.msra.mxu0 %v1111
    %v1113 = vand.u32 %v783, 4294901760
    %1114 = vmatpush.msra.mxu0 %v1113
    %v1115 = vand.u32 %v782, 4294901760
    %1116 = vmatpush.msra.mxu0 %v1115
    %v1117 = vand.u32 %v781, 4294901760
    %1118 = vmatpush.msra.mxu0 %v1117
    %v1119 = vand.u32 %v780, 4294901760
    %1120 = vmatpush.msra.mxu0 %v1119
    %v1121 = vand.u32 %v779, 4294901760
    %1122 = vmatpush.msra.mxu0 %v1121
    %v1123 = vand.u32 %v778, 4294901760
    %1124 = vmatpush.msra.mxu0 %v1123
    %v1125 = vand.u32 %v777, 4294901760
    %1126 = vmatpush.msra.mxu0 %v1125
    %v1127 = vand.u32 %v776, 4294901760
    %1128 = vmatpush.msra.mxu0 %v1127
    %v1129 = vand.u32 %v774, 4294901760
    %1130 = vmatmul.f32.gmra.mxu0 %v1129
    %v1131 = vpop.f32.mrf.mxu0
    %v1132 = vadd.f32 %v1095, %v1131
    %1133 = vdwg.mxu0
    %v1134 = vmax.f32 %v1132, 0.0
    %s1135 = scalar_lea.vmem [#allocation4], 256
    %v1136 = vld [vmem:[%s1135] sm:$0xff]
    %v1137 = vld [vmem:[%s1135 + $0x8] sm:$0xff]
    %v1138 = vld [vmem:[%s1135 + $0x10] sm:$0xff]
    %v1139 = vld [vmem:[%s1135 + $0x18] sm:$0xff]
    %v1140 = vld [vmem:[%s1135 + $0x20] sm:$0xff]
    %v1141 = vld [vmem:[%s1135 + $0x28] sm:$0xff]
    %v1142 = vld [vmem:[%s1135 + $0x30] sm:$0xff]
    %v1143 = vld [vmem:[%s1135 + $0x38] sm:$0xff]
    %v1144 = vld [vmem:[%s1135 + $0x40] sm:$0xff]
    %v1145 = vld [vmem:[%s1135 + $0x48] sm:$0xff]
    %v1146 = vld [vmem:[%s1135 + $0x50] sm:$0xff]
    %v1147 = vld [vmem:[%s1135 + $0x58] sm:$0xff]
    %v1148 = vld [vmem:[%s1135 + $0x60] sm:$0xff]
    %v1149 = vld [vmem:[%s1135 + $0x68] sm:$0xff]
    %v1150 = vld [vmem:[%s1135 + $0x70] sm:$0xff]
    %v1151 = vld [vmem:[%s1135 + $0x78] sm:$0xff]
    %v1152 = vperm.slane %v49, 5
    %v1153 = vand.u32 %v1151, 4294901760
    %1154 = vmatpush.msra.mxu0 %v1153
    %v1155 = vand.u32 %v1150, 4294901760
    %1156 = vmatpush.msra.mxu0 %v1155
    %v1157 = vand.u32 %v1149, 4294901760
    %1158 = vmatpush.msra.mxu0 %v1157
    %v1159 = vand.u32 %v1148, 4294901760
    %1160 = vmatpush.msra.mxu0 %v1159
    %v1161 = vand.u32 %v1147, 4294901760
    %1162 = vmatpush.msra.mxu0 %v1161
    %v1163 = vand.u32 %v1146, 4294901760
    %1164 = vmatpush.msra.mxu0 %v1163
    %v1165 = vand.u32 %v1145, 4294901760
    %1166 = vmatpush.msra.mxu0 %v1165
    %v1167 = vand.u32 %v1144, 4294901760
    %1168 = vmatpush.msra.mxu0 %v1167
    %v1169 = vand.u32 %v1143, 4294901760
    %1170 = vmatpush.msra.mxu0 %v1169
    %v1171 = vand.u32 %v1142, 4294901760
    %1172 = vmatpush.msra.mxu0 %v1171
    %v1173 = vand.u32 %v1141, 4294901760
    %1174 = vmatpush.msra.mxu0 %v1173
    %v1175 = vand.u32 %v1140, 4294901760
    %1176 = vmatpush.msra.mxu0 %v1175
    %v1177 = vand.u32 %v1139, 4294901760
    %1178 = vmatpush.msra.mxu0 %v1177
    %v1179 = vand.u32 %v1138, 4294901760
    %1180 = vmatpush.msra.mxu0 %v1179
    %v1181 = vand.u32 %v1137, 4294901760
    %1182 = vmatpush.msra.mxu0 %v1181
    %v1183 = vand.u32 %v1136, 4294901760
    %1184 = vmatpush.msra.mxu0 %v1183
    %v1185 = vand.u32 %v1134, 4294901760
    %v1186 = vsub.f32 %v1134, %v1185
    %v1187 = vand.u32 %v1186, 4294901760
    %v1188 = vsub.f32 %v1186, %v1187
    %v1189 = vand.u32 %v1188, 4294901760
    %1190 = vmatmul.f32.gmra.mxu0 %v1189
    %v1191 = vpop.f32.mrf.mxu0
    %v1192 = vadd.f32 %v1152, %v1191
    %1193 = vdwg.mxu0
    %v1194 = vand.u32 %v1151, 4294901760
    %v1195 = vsub.f32 %v1151, %v1194
    %v1196 = vand.u32 %v1195, 4294901760
    %v1197 = vsub.f32 %v1195, %v1196
    %v1198 = vand.u32 %v1197, 4294901760
    %1199 = vmatpush.msra.mxu0 %v1198
    %v1200 = vand.u32 %v1150, 4294901760
    %v1201 = vsub.f32 %v1150, %v1200
    %v1202 = vand.u32 %v1201, 4294901760
    %v1203 = vsub.f32 %v1201, %v1202
    %v1204 = vand.u32 %v1203, 4294901760
    %1205 = vmatpush.msra.mxu0 %v1204
    %v1206 = vand.u32 %v1149, 4294901760
    %v1207 = vsub.f32 %v1149, %v1206
    %v1208 = vand.u32 %v1207, 4294901760
    %v1209 = vsub.f32 %v1207, %v1208
    %v1210 = vand.u32 %v1209, 4294901760
    %1211 = vmatpush.msra.mxu0 %v1210
    %v1212 = vand.u32 %v1148, 4294901760
    %v1213 = vsub.f32 %v1148, %v1212
    %v1214 = vand.u32 %v1213, 4294901760
    %v1215 = vsub.f32 %v1213, %v1214
    %v1216 = vand.u32 %v1215, 4294901760
    %1217 = vmatpush.msra.mxu0 %v1216
    %v1218 = vand.u32 %v1147, 4294901760
    %v1219 = vsub.f32 %v1147, %v1218
    %v1220 = vand.u32 %v1219, 4294901760
    %v1221 = vsub.f32 %v1219, %v1220
    %v1222 = vand.u32 %v1221, 4294901760
    %1223 = vmatpush.msra.mxu0 %v1222
    %v1224 = vand.u32 %v1146, 4294901760
    %v1225 = vsub.f32 %v1146, %v1224
    %v1226 = vand.u32 %v1225, 4294901760
    %v1227 = vsub.f32 %v1225, %v1226
    %v1228 = vand.u32 %v1227, 4294901760
    %1229 = vmatpush.msra.mxu0 %v1228
    %v1230 = vand.u32 %v1145, 4294901760
    %v1231 = vsub.f32 %v1145, %v1230
    %v1232 = vand.u32 %v1231, 4294901760
    %v1233 = vsub.f32 %v1231, %v1232
    %v1234 = vand.u32 %v1233, 4294901760
    %1235 = vmatpush.msra.mxu0 %v1234
    %v1236 = vand.u32 %v1144, 4294901760
    %v1237 = vsub.f32 %v1144, %v1236
    %v1238 = vand.u32 %v1237, 4294901760
    %v1239 = vsub.f32 %v1237, %v1238
    %v1240 = vand.u32 %v1239, 4294901760
    %1241 = vmatpush.msra.mxu0 %v1240
    %v1242 = vand.u32 %v1143, 4294901760
    %v1243 = vsub.f32 %v1143, %v1242
    %v1244 = vand.u32 %v1243, 4294901760
    %v1245 = vsub.f32 %v1243, %v1244
    %v1246 = vand.u32 %v1245, 4294901760
    %1247 = vmatpush.msra.mxu0 %v1246
    %v1248 = vand.u32 %v1142, 4294901760
    %v1249 = vsub.f32 %v1142, %v1248
    %v1250 = vand.u32 %v1249, 4294901760
    %v1251 = vsub.f32 %v1249, %v1250
    %v1252 = vand.u32 %v1251, 4294901760
    %1253 = vmatpush.msra.mxu0 %v1252
    %v1254 = vand.u32 %v1141, 4294901760
    %v1255 = vsub.f32 %v1141, %v1254
    %v1256 = vand.u32 %v1255, 4294901760
    %v1257 = vsub.f32 %v1255, %v1256
    %v1258 = vand.u32 %v1257, 4294901760
    %1259 = vmatpush.msra.mxu0 %v1258
    %v1260 = vand.u32 %v1140, 4294901760
    %v1261 = vsub.f32 %v1140, %v1260
    %v1262 = vand.u32 %v1261, 4294901760
    %v1263 = vsub.f32 %v1261, %v1262
    %v1264 = vand.u32 %v1263, 4294901760
    %1265 = vmatpush.msra.mxu0 %v1264
    %v1266 = vand.u32 %v1139, 4294901760
    %v1267 = vsub.f32 %v1139, %v1266
    %v1268 = vand.u32 %v1267, 4294901760
    %v1269 = vsub.f32 %v1267, %v1268
    %v1270 = vand.u32 %v1269, 4294901760
    %1271 = vmatpush.msra.mxu0 %v1270
    %v1272 = vand.u32 %v1138, 4294901760
    %v1273 = vsub.f32 %v1138, %v1272
    %v1274 = vand.u32 %v1273, 4294901760
    %v1275 = vsub.f32 %v1273, %v1274
    %v1276 = vand.u32 %v1275, 4294901760
    %1277 = vmatpush.msra.mxu0 %v1276
    %v1278 = vand.u32 %v1137, 4294901760
    %v1279 = vsub.f32 %v1137, %v1278
    %v1280 = vand.u32 %v1279, 4294901760
    %v1281 = vsub.f32 %v1279, %v1280
    %v1282 = vand.u32 %v1281, 4294901760
    %1283 = vmatpush.msra.mxu0 %v1282
    %v1284 = vand.u32 %v1136, 4294901760
    %v1285 = vsub.f32 %v1136, %v1284
    %v1286 = vand.u32 %v1285, 4294901760
    %v1287 = vsub.f32 %v1285, %v1286
    %v1288 = vand.u32 %v1287, 4294901760
    %1289 = vmatpush.msra.mxu0 %v1288
    %v1290 = vand.u32 %v1134, 4294901760
    %1291 = vmatmul.f32.gmra.mxu0 %v1290
    %v1292 = vpop.f32.mrf.mxu0
    %v1293 = vadd.f32 %v1192, %v1292
    %1294 = vdwg.mxu0
    %v1295 = vand.u32 %v1151, 4294901760
    %v1296 = vsub.f32 %v1151, %v1295
    %1297 = vmatpush.msra.mxu0 %v1296
    %v1298 = vand.u32 %v1150, 4294901760
    %v1299 = vsub.f32 %v1150, %v1298
    %1300 = vmatpush.msra.mxu0 %v1299
    %v1301 = vand.u32 %v1149, 4294901760
    %v1302 = vsub.f32 %v1149, %v1301
    %1303 = vmatpush.msra.mxu0 %v1302
    %v1304 = vand.u32 %v1148, 4294901760
    %v1305 = vsub.f32 %v1148, %v1304
    %1306 = vmatpush.msra.mxu0 %v1305
    %v1307 = vand.u32 %v1147, 4294901760
    %v1308 = vsub.f32 %v1147, %v1307
    %1309 = vmatpush.msra.mxu0 %v1308
    %v1310 = vand.u32 %v1146, 4294901760
    %v1311 = vsub.f32 %v1146, %v1310
    %1312 = vmatpush.msra.mxu0 %v1311
    %v1313 = vand.u32 %v1145, 4294901760
    %v1314 = vsub.f32 %v1145, %v1313
    %1315 = vmatpush.msra.mxu0 %v1314
    %v1316 = vand.u32 %v1144, 4294901760
    %v1317 = vsub.f32 %v1144, %v1316
    %1318 = vmatpush.msra.mxu0 %v1317
    %v1319 = vand.u32 %v1143, 4294901760
    %v1320 = vsub.f32 %v1143, %v1319
    %1321 = vmatpush.msra.mxu0 %v1320
    %v1322 = vand.u32 %v1142, 4294901760
    %v1323 = vsub.f32 %v1142, %v1322
    %1324 = vmatpush.msra.mxu0 %v1323
    %v1325 = vand.u32 %v1141, 4294901760
    %v1326 = vsub.f32 %v1141, %v1325
    %1327 = vmatpush.msra.mxu0 %v1326
    %v1328 = vand.u32 %v1140, 4294901760
    %v1329 = vsub.f32 %v1140, %v1328
    %1330 = vmatpush.msra.mxu0 %v1329
    %v1331 = vand.u32 %v1139, 4294901760
    %v1332 = vsub.f32 %v1139, %v1331
    %1333 = vmatpush.msra.mxu0 %v1332
    %v1334 = vand.u32 %v1138, 4294901760
    %v1335 = vsub.f32 %v1138, %v1334
    %1336 = vmatpush.msra.mxu0 %v1335
    %v1337 = vand.u32 %v1137, 4294901760
    %v1338 = vsub.f32 %v1137, %v1337
    %1339 = vmatpush.msra.mxu0 %v1338
    %v1340 = vand.u32 %v1136, 4294901760
    %v1341 = vsub.f32 %v1136, %v1340
    %1342 = vmatpush.msra.mxu0 %v1341
    %v1343 = vand.u32 %v1134, 4294901760
    %v1344 = vsub.f32 %v1134, %v1343
    %1345 = vmatmul.f32.gmra.mxu0 %v1344
    %v1346 = vpop.f32.mrf.mxu0
    %v1347 = vadd.f32 %v1293, %v1346
    %1348 = vdwg.mxu0
    %v1349 = vand.u32 %v1151, 4294901760
    %1350 = vmatpush.msra.mxu0 %v1349
    %v1351 = vand.u32 %v1150, 4294901760
    %1352 = vmatpush.msra.mxu0 %v1351
    %v1353 = vand.u32 %v1149, 4294901760
    %1354 = vmatpush.msra.mxu0 %v1353
    %v1355 = vand.u32 %v1148, 4294901760
    %1356 = vmatpush.msra.mxu0 %v1355
    %v1357 = vand.u32 %v1147, 4294901760
    %1358 = vmatpush.msra.mxu0 %v1357
    %v1359 = vand.u32 %v1146, 4294901760
    %1360 = vmatpush.msra.mxu0 %v1359
    %v1361 = vand.u32 %v1145, 4294901760
    %1362 = vmatpush.msra.mxu0 %v1361
    %v1363 = vand.u32 %v1144, 4294901760
    %1364 = vmatpush.msra.mxu0 %v1363
    %v1365 = vand.u32 %v1143, 4294901760
    %1366 = vmatpush.msra.mxu0 %v1365
    %v1367 = vand.u32 %v1142, 4294901760
    %1368 = vmatpush.msra.mxu0 %v1367
    %v1369 = vand.u32 %v1141, 4294901760
    %1370 = vmatpush.msra.mxu0 %v1369
    %v1371 = vand.u32 %v1140, 4294901760
    %1372 = vmatpush.msra.mxu0 %v1371
    %v1373 = vand.u32 %v1139, 4294901760
    %1374 = vmatpush.msra.mxu0 %v1373
    %v1375 = vand.u32 %v1138, 4294901760
    %1376 = vmatpush.msra.mxu0 %v1375
    %v1377 = vand.u32 %v1137, 4294901760
    %1378 = vmatpush.msra.mxu0 %v1377
    %v1379 = vand.u32 %v1136, 4294901760
    %1380 = vmatpush.msra.mxu0 %v1379
    %v1381 = vand.u32 %v1134, 4294901760
    %v1382 = vsub.f32 %v1134, %v1381
    %v1383 = vand.u32 %v1382, 4294901760
    %1384 = vmatmul.f32.gmra.mxu0 %v1383
    %v1385 = vpop.f32.mrf.mxu0
    %v1386 = vadd.f32 %v1347, %v1385
    %1387 = vdwg.mxu0
    %v1388 = vand.u32 %v1151, 4294901760
    %v1389 = vsub.f32 %v1151, %v1388
    %v1390 = vand.u32 %v1389, 4294901760
    %1391 = vmatpush.msra.mxu0 %v1390
    %v1392 = vand.u32 %v1150, 4294901760
    %v1393 = vsub.f32 %v1150, %v1392
    %v1394 = vand.u32 %v1393, 4294901760
    %1395 = vmatpush.msra.mxu0 %v1394
    %v1396 = vand.u32 %v1149, 4294901760
    %v1397 = vsub.f32 %v1149, %v1396
    %v1398 = vand.u32 %v1397, 4294901760
    %1399 = vmatpush.msra.mxu0 %v1398
    %v1400 = vand.u32 %v1148, 4294901760
    %v1401 = vsub.f32 %v1148, %v1400
    %v1402 = vand.u32 %v1401, 4294901760
    %1403 = vmatpush.msra.mxu0 %v1402
    %v1404 = vand.u32 %v1147, 4294901760
    %v1405 = vsub.f32 %v1147, %v1404
    %v1406 = vand.u32 %v1405, 4294901760
    %1407 = vmatpush.msra.mxu0 %v1406
    %v1408 = vand.u32 %v1146, 4294901760
    %v1409 = vsub.f32 %v1146, %v1408
    %v1410 = vand.u32 %v1409, 4294901760
    %1411 = vmatpush.msra.mxu0 %v1410
    %v1412 = vand.u32 %v1145, 4294901760
    %v1413 = vsub.f32 %v1145, %v1412
    %v1414 = vand.u32 %v1413, 4294901760
    %1415 = vmatpush.msra.mxu0 %v1414
    %v1416 = vand.u32 %v1144, 4294901760
    %v1417 = vsub.f32 %v1144, %v1416
    %v1418 = vand.u32 %v1417, 4294901760
    %1419 = vmatpush.msra.mxu0 %v1418
    %v1420 = vand.u32 %v1143, 4294901760
    %v1421 = vsub.f32 %v1143, %v1420
    %v1422 = vand.u32 %v1421, 4294901760
    %1423 = vmatpush.msra.mxu0 %v1422
    %v1424 = vand.u32 %v1142, 4294901760
    %v1425 = vsub.f32 %v1142, %v1424
    %v1426 = vand.u32 %v1425, 4294901760
    %1427 = vmatpush.msra.mxu0 %v1426
    %v1428 = vand.u32 %v1141, 4294901760
    %v1429 = vsub.f32 %v1141, %v1428
    %v1430 = vand.u32 %v1429, 4294901760
    %1431 = vmatpush.msra.mxu0 %v1430
    %v1432 = vand.u32 %v1140, 4294901760
    %v1433 = vsub.f32 %v1140, %v1432
    %v1434 = vand.u32 %v1433, 4294901760
    %1435 = vmatpush.msra.mxu0 %v1434
    %v1436 = vand.u32 %v1139, 4294901760
    %v1437 = vsub.f32 %v1139, %v1436
    %v1438 = vand.u32 %v1437, 4294901760
    %1439 = vmatpush.msra.mxu0 %v1438
    %v1440 = vand.u32 %v1138, 4294901760
    %v1441 = vsub.f32 %v1138, %v1440
    %v1442 = vand.u32 %v1441, 4294901760
    %1443 = vmatpush.msra.mxu0 %v1442
    %v1444 = vand.u32 %v1137, 4294901760
    %v1445 = vsub.f32 %v1137, %v1444
    %v1446 = vand.u32 %v1445, 4294901760
    %1447 = vmatpush.msra.mxu0 %v1446
    %v1448 = vand.u32 %v1136, 4294901760
    %v1449 = vsub.f32 %v1136, %v1448
    %v1450 = vand.u32 %v1449, 4294901760
    %1451 = vmatpush.msra.mxu0 %v1450
    %v1452 = vand.u32 %v1134, 4294901760
    %1453 = vmatmul.f32.gmra.mxu0 %v1452
    %v1454 = vpop.f32.mrf.mxu0
    %v1455 = vadd.f32 %v1386, %v1454
    %1456 = vdwg.mxu0
    %v1457 = vand.u32 %v1151, 4294901760
    %1458 = vmatpush.msra.mxu0 %v1457
    %v1459 = vand.u32 %v1150, 4294901760
    %1460 = vmatpush.msra.mxu0 %v1459
    %v1461 = vand.u32 %v1149, 4294901760
    %1462 = vmatpush.msra.mxu0 %v1461
    %v1463 = vand.u32 %v1148, 4294901760
    %1464 = vmatpush.msra.mxu0 %v1463
    %v1465 = vand.u32 %v1147, 4294901760
    %1466 = vmatpush.msra.mxu0 %v1465
    %v1467 = vand.u32 %v1146, 4294901760
    %1468 = vmatpush.msra.mxu0 %v1467
    %v1469 = vand.u32 %v1145, 4294901760
    %1470 = vmatpush.msra.mxu0 %v1469
    %v1471 = vand.u32 %v1144, 4294901760
    %1472 = vmatpush.msra.mxu0 %v1471
    %v1473 = vand.u32 %v1143, 4294901760
    %1474 = vmatpush.msra.mxu0 %v1473
    %v1475 = vand.u32 %v1142, 4294901760
    %1476 = vmatpush.msra.mxu0 %v1475
    %v1477 = vand.u32 %v1141, 4294901760
    %1478 = vmatpush.msra.mxu0 %v1477
    %v1479 = vand.u32 %v1140, 4294901760
    %1480 = vmatpush.msra.mxu0 %v1479
    %v1481 = vand.u32 %v1139, 4294901760
    %1482 = vmatpush.msra.mxu0 %v1481
    %v1483 = vand.u32 %v1138, 4294901760
    %1484 = vmatpush.msra.mxu0 %v1483
    %v1485 = vand.u32 %v1137, 4294901760
    %1486 = vmatpush.msra.mxu0 %v1485
    %v1487 = vand.u32 %v1136, 4294901760
    %1488 = vmatpush.msra.mxu0 %v1487
    %v1489 = vand.u32 %v1134, 4294901760
    %1490 = vmatmul.f32.gmra.mxu0 %v1489
    %v1491 = vpop.f32.mrf.mxu0
    %v1492 = vadd.f32 %v1455, %v1491
    %1493 = vdwg.mxu0
    %1494 = vst [vmem:[%s4] sm:$0xff] %v1492
    // Predicated region
    $region26: #{dqn_conv_forward.1} parent=1 // pred_check
      _
    $region27: #{dqn_conv_forward.1} parent=1 // pred_check_branch
      %1496 = sbr.rel (0) target = $region29
    $region28: #{dqn_conv_forward.1} parent=1 // pred_region
      _
    $region29: #{dqn_conv_forward.1} parent=1 // pred_fallthru
      _
    // Predicated region
    $region30: #{dqn_conv_forward.1} parent=1 // pred_check
      _
    $region31: #{dqn_conv_forward.1} parent=1 // pred_check_branch
      %1498 = sbr.rel (0) target = $region33
    $region32: #{dqn_conv_forward.1} parent=1 // pred_region
      _
    $region33: #{dqn_conv_forward.1} parent=1 // pred_fallthru
      _
    %1499 = vsyncpa [#allocation3], 1
    %1500 = vsyncpa [#allocation5], 1

</llo_original>
